<compile_context>
chip_gen: v7x
topology: tpu7x:2x2x1
jax: 0.10.0
libtpu: 0.0.40
codegen_flags: <defaults>
</compile_context>

<pallas_src>
import numpy as np
import jax
import jax.numpy as jnp
from jax.experimental import pallas as pl
from jax.experimental.pallas import tpu as pltpu


def _round_up(n, m):
    return ((n + m - 1) // m) * m


def _sigmoid_via_tanh(x):
    # sigmoid(x) == 0.5 * tanh(0.5 * x) + 0.5 : one EUP op + two VPU ops,
    # avoids exp + divide on the serial recurrence.
    return 0.5 * jnp.tanh(0.5 * x) + 0.5


def lstm_kernel(x_ref, w_ih_ref, w_hh_ref, b_ref, w_lin_ref, b_lin_ref,
                out_ref):
    # x_ref:     (S, I)       f32
    # w_ih_ref:  (I, 4*Hp)    bf16, gate blocks of width Hp (128-aligned), zero padded
    # w_hh_ref:  (Hp, 4*Hp)   bf16, rows >= H are zero
    # b_ref:     (1, 4*Hp)    f32, b_ih + b_hh, zero padded
    # w_lin_ref: (Hp, Op)     bf16, rows >= H and cols >= O are zero
    # b_lin_ref: (1, Op)      f32, cols >= O are zero
    # out_ref:   (1, Op)      f32 (lane-dense, 128-wide)
    S = x_ref.shape[0]
    Hp = w_hh_ref.shape[0]

    # Input projection for every timestep at once (one bf16 MXU pass), bias
    # folded into the f32 accumulator.  Kept as a value (4 vregs), no scratch.
    gx = (
        jnp.dot(x_ref[...].astype(jnp.bfloat16), w_ih_ref[...],
                preferred_element_type=jnp.float32)
        + b_ref[...]
    )  # (S, 4*Hp) f32

    # Hoist the (loop-invariant) recurrent weight load out of the unrolled loop.
    w_hh = w_hh_ref[...]  # (Hp, 4*Hp) bf16

    h = jnp.zeros((1, Hp), jnp.float32)
    c = jnp.zeros((1, Hp), jnp.float32)

    # Fully unrolled recurrence (S is static and small); static row slices of
    # the gx value, 128-lane-aligned full-vreg gate slices (order i, f, g, o).
    for t in range(S):
        gates = gx[t:t + 1, :] + jnp.dot(
            h.astype(jnp.bfloat16), w_hh,
            preferred_element_type=jnp.float32)          # (1, 4*Hp) f32
        i = _sigmoid_via_tanh(gates[:, 0 * Hp:1 * Hp])
        f = _sigmoid_via_tanh(gates[:, 1 * Hp:2 * Hp])
        g = jnp.tanh(gates[:, 2 * Hp:3 * Hp])
        o = _sigmoid_via_tanh(gates[:, 3 * Hp:4 * Hp])
        c = f * c + i * g
        h = o * jnp.tanh(c)

    # Lane-dense (128-wide) final projection and unmasked store.
    out_ref[...] = (
        jnp.dot(h.astype(jnp.bfloat16), w_lin_ref[...],
                preferred_element_type=jnp.float32)
        + b_lin_ref[...]
    )


def lstm_model_forward(x, params, hidden_size, output_size):
    """x: (seq_len, input_size) f32. Returns (output_size,) == predictions[-1]."""
    S, I = x.shape
    H = hidden_size
    O = output_size
    Hp = params["w_hh_p"].shape[0]
    Op = params["w_lin_p"].shape[1]

    # Alignment / residency sanity checks.
    assert Hp % 128 == 0 and Op % 128 == 0, "padded widths must be 128-lane multiples"
    assert params["w_ih_p"].shape == (I, 4 * Hp)
    assert params["w_hh_p"].shape == (Hp, 4 * Hp)
    assert params["b_p"].shape == (1, 4 * Hp)
    assert params["b_lin_p"].shape == (1, Op)
    # gx value + weights must stay well under scoped VMEM / vreg budget.
    assert S * 4 * Hp * 4 < 1 * 1024 * 1024, "tile the S axis for long sequences"

    # Cost estimate with the real H (not the padded Hp).
    flops = int(2 * S * I * 4 * H + 2 * S * H * 4 * H + 2 * H * O)
    transcendentals = int(S * 5 * H)
    bytes_accessed = int(
        4 * x.size
        + 2 * (params["w_ih_p"].size + params["w_hh_p"].size + params["w_lin_p"].size)
        + 4 * (params["b_p"].size + params["b_lin_p"].size + Op)
    )

    vmem_spec = pl.BlockSpec(memory_space=pltpu.MemorySpace.VMEM)
    out = pl.pallas_call(
        lstm_kernel,
        out_shape=jax.ShapeDtypeStruct((1, Op), jnp.float32),
        in_specs=[vmem_spec] * 6,
        out_specs=vmem_spec,
        cost_estimate=pl.CostEstimate(flops=flops,
                                      transcendentals=transcendentals,
                                      bytes_accessed=bytes_accessed),
    )(x, params["w_ih_p"], params["w_hh_p"], params["b_p"],
      params["w_lin_p"], params["b_lin_p"])
    return out[0, :O]


def init_raw_params(key, input_size, hidden_size, output_size):
    """PyTorch-shaped params, uniform(-1/sqrt(H), 1/sqrt(H)) like nn.LSTM/Linear."""
    k = jax.random.split(key, 6)
    s = 1.0 / np.sqrt(hidden_size)
    return {
        "w_ih": jax.random.uniform(k[0], (4 * hidden_size, input_size), jnp.float32, -s, s),
        "w_hh": jax.random.uniform(k[1], (4 * hidden_size, hidden_size), jnp.float32, -s, s),
        "b_ih": jax.random.uniform(k[2], (4 * hidden_size,), jnp.float32, -s, s),
        "b_hh": jax.random.uniform(k[3], (4 * hidden_size,), jnp.float32, -s, s),
        "w_lin": jax.random.uniform(k[4], (output_size, hidden_size), jnp.float32, -s, s),
        "b_lin": jax.random.uniform(k[5], (output_size,), jnp.float32, -s, s),
    }


def pack_padded_params(raw):
    """Transpose + zero-pad gate blocks to 128-lane widths; weights stored bf16."""
    w_ih, w_hh = raw["w_ih"], raw["w_hh"]
    b = raw["b_ih"] + raw["b_hh"]
    w_lin, b_lin = raw["w_lin"], raw["b_lin"]

    four_h, I = w_ih.shape
    H = four_h // 4
    O = w_lin.shape[0]
    Hp = max(128, _round_up(H, 128))
    Op = max(128, _round_up(O, 128))

    w_ih_p = jnp.zeros((I, 4 * Hp), jnp.float32)
    w_hh_p = jnp.zeros((Hp, 4 * Hp), jnp.float32)
    b_p = jnp.zeros((1, 4 * Hp), jnp.float32)
    for k in range(4):  # gate order i, f, g, o (torch layout)
        w_ih_p = w_ih_p.at[:, k * Hp:k * Hp + H].set(w_ih[k * H:(k + 1) * H, :].T)
        w_hh_p = w_hh_p.at[:H, k * Hp:k * Hp + H].set(w_hh[k * H:(k + 1) * H, :].T)
        b_p = b_p.at[:, k * Hp:k * Hp + H].set(b[k * H:(k + 1) * H][None, :])
    w_lin_p = jnp.zeros((Hp, Op), jnp.float32).at[:H, :O].set(w_lin.T)
    b_lin_p = jnp.zeros((1, Op), jnp.float32).at[:, :O].set(b_lin[None, :])

    return {
        "w_ih_p": w_ih_p.astype(jnp.bfloat16),    # (I, 4*Hp)  bf16
        "w_hh_p": w_hh_p.astype(jnp.bfloat16),    # (Hp, 4*Hp) bf16
        "b_p": b_p,                                # (1, 4*Hp)  f32
        "w_lin_p": w_lin_p.astype(jnp.bfloat16),   # (Hp, Op)   bf16
        "b_lin_p": b_lin_p,                        # (1, Op)    f32
    }


def lstm_model_reference(x, raw):
    """Pure-JAX f32 reference of the same forward pass (unpadded)."""
    w_ih, w_hh = raw["w_ih"], raw["w_hh"]
    b = (raw["b_ih"] + raw["b_hh"])[None, :]
    w_lin, b_lin = raw["w_lin"], raw["b_lin"]
    H = w_hh.shape[1]
    h = jnp.zeros((1, H), jnp.float32)
    c = jnp.zeros((1, H), jnp.float32)
    gx_all = x @ w_ih.T + b
    for t in range(x.shape[0]):
        gates = gx_all[t:t + 1] + h @ w_hh.T
        i = jax.nn.sigmoid(gates[:, 0:H])
        f = jax.nn.sigmoid(gates[:, H:2 * H])
        g = jnp.tanh(gates[:, 2 * H:3 * H])
        o = jax.nn.sigmoid(gates[:, 3 * H:4 * H])
        c = f * c + i * g
        h = o * jnp.tanh(c)
    return (h @ w_lin.T + b_lin[None, :])[0]


if __name__ == "__main__":
    input_size, hidden_size, output_size = 4, 32, 4
    seq_len = 8

    key = jax.random.PRNGKey(0)
    kx, kp = jax.random.split(key)
    x = jax.random.normal(kx, (seq_len, input_size), jnp.float32)

    raw = init_raw_params(kp, input_size, hidden_size, output_size)
    params = pack_padded_params(raw)

    pred = lstm_model_forward(x, params, hidden_size, output_size)
    pred = jax.block_until_ready(pred)

    ref = lstm_model_reference(x, raw)
    # bf16 MXU operands: tolerance loosened vs. the f32 reference.
    np.testing.assert_allclose(np.asarray(pred), np.asarray(ref),
                               rtol=2e-2, atol=2e-2)

    print("KERNEL_OK")
</pallas_src>

<mosaic_0001>
module attributes {stable_mosaic.version = 11 : i64} {
  func.func @lstm_kernel(%arg0: memref<8x4xf32, #tpu.memory_space<vmem>>, %arg1: memref<4x512xbf16, #tpu.memory_space<vmem>>, %arg2: memref<128x512xbf16, #tpu.memory_space<vmem>>, %arg3: memref<1x512xf32, #tpu.memory_space<vmem>>, %arg4: memref<128x128xbf16, #tpu.memory_space<vmem>>, %arg5: memref<1x128xf32, #tpu.memory_space<vmem>>, %arg6: memref<1x128xf32, #tpu.memory_space<vmem>>) attributes {dimension_semantics = [], scalar_prefetch = 0 : i64, scratch_operands = 0 : i64, tpu.core_type = #tpu.core_type<tc>} {
    %c0 = arith.constant 0 : index
    %c0_0 = arith.constant 0 : index
    %0 = vector.load %arg0[%c0, %c0_0] : memref<8x4xf32, #tpu.memory_space<vmem>>, vector<8x4xf32>
    %1 = arith.truncf %0 : vector<8x4xf32> to vector<8x4xbf16>
    %c0_1 = arith.constant 0 : index
    %c0_2 = arith.constant 0 : index
    %2 = vector.load %arg1[%c0_1, %c0_2] : memref<4x512xbf16, #tpu.memory_space<vmem>>, vector<4x512xbf16>
    %cst = arith.constant dense<0.000000e+00> : vector<8x512xf32>
    %3 = tpu.matmul %1, %2, %cst {dimension_numbers = #tpu.dot_dimension_numbers<[1], [0], [0], [1], [0, 0, 1, 1], [], []>} : vector<8x4xbf16>, vector<4x512xbf16>, vector<8x512xf32> -> vector<8x512xf32>
    %c0_3 = arith.constant 0 : index
    %c0_4 = arith.constant 0 : index
    %4 = vector.load %arg3[%c0_3, %c0_4] : memref<1x512xf32, #tpu.memory_space<vmem>>, vector<1x512xf32>
    %5 = vector.broadcast %4 : vector<1x512xf32> to vector<8x512xf32>
    %6 = arith.addf %3, %5 : vector<8x512xf32>
    %c0_5 = arith.constant 0 : index
    %c0_6 = arith.constant 0 : index
    %7 = vector.load %arg2[%c0_5, %c0_6] : memref<128x512xbf16, #tpu.memory_space<vmem>>, vector<128x512xbf16>
    %cst_7 = arith.constant 0.000000e+00 : f32
    %8 = vector.broadcast %cst_7 : f32 to vector<1x128xf32>
    %cst_8 = arith.constant 0.000000e+00 : f32
    %9 = vector.broadcast %cst_8 : f32 to vector<1x128xf32>
    %10 = vector.extract_strided_slice %6 {offsets = [0, 0], sizes = [1, 512], strides = [1, 1]} : vector<8x512xf32> to vector<1x512xf32>
    %11 = arith.truncf %8 : vector<1x128xf32> to vector<1x128xbf16>
    %cst_9 = arith.constant dense<0.000000e+00> : vector<1x512xf32>
    %12 = tpu.matmul %11, %7, %cst_9 {dimension_numbers = #tpu.dot_dimension_numbers<[1], [0], [0], [1], [0, 0, 1, 1], [], []>} : vector<1x128xbf16>, vector<128x512xbf16>, vector<1x512xf32> -> vector<1x512xf32>
    %13 = arith.addf %10, %12 : vector<1x512xf32>
    %14 = vector.extract_strided_slice %13 {offsets = [0, 0], sizes = [1, 128], strides = [1, 1]} : vector<1x512xf32> to vector<1x128xf32>
    %cst_10 = arith.constant 5.000000e-01 : f32
    %15 = vector.broadcast %cst_10 : f32 to vector<1x128xf32>
    %16 = arith.mulf %15, %14 : vector<1x128xf32>
    %17 = math.tanh %16 : vector<1x128xf32>
    %cst_11 = arith.constant 5.000000e-01 : f32
    %18 = vector.broadcast %cst_11 : f32 to vector<1x128xf32>
    %19 = arith.mulf %18, %17 : vector<1x128xf32>
    %cst_12 = arith.constant 5.000000e-01 : f32
    %20 = vector.broadcast %cst_12 : f32 to vector<1x128xf32>
    %21 = arith.addf %19, %20 : vector<1x128xf32>
    %22 = vector.extract_strided_slice %13 {offsets = [0, 128], sizes = [1, 128], strides = [1, 1]} : vector<1x512xf32> to vector<1x128xf32>
    %cst_13 = arith.constant 5.000000e-01 : f32
    %23 = vector.broadcast %cst_13 : f32 to vector<1x128xf32>
    %24 = arith.mulf %23, %22 : vector<1x128xf32>
    %25 = math.tanh %24 : vector<1x128xf32>
    %cst_14 = arith.constant 5.000000e-01 : f32
    %26 = vector.broadcast %cst_14 : f32 to vector<1x128xf32>
    %27 = arith.mulf %26, %25 : vector<1x128xf32>
    %cst_15 = arith.constant 5.000000e-01 : f32
    %28 = vector.broadcast %cst_15 : f32 to vector<1x128xf32>
    %29 = arith.addf %27, %28 : vector<1x128xf32>
    %30 = vector.extract_strided_slice %13 {offsets = [0, 256], sizes = [1, 128], strides = [1, 1]} : vector<1x512xf32> to vector<1x128xf32>
    %31 = math.tanh %30 : vector<1x128xf32>
    %32 = vector.extract_strided_slice %13 {offsets = [0, 384], sizes = [1, 128], strides = [1, 1]} : vector<1x512xf32> to vector<1x128xf32>
    %cst_16 = arith.constant 5.000000e-01 : f32
    %33 = vector.broadcast %cst_16 : f32 to vector<1x128xf32>
    %34 = arith.mulf %33, %32 : vector<1x128xf32>
    %35 = math.tanh %34 : vector<1x128xf32>
    %cst_17 = arith.constant 5.000000e-01 : f32
    %36 = vector.broadcast %cst_17 : f32 to vector<1x128xf32>
    %37 = arith.mulf %36, %35 : vector<1x128xf32>
    %cst_18 = arith.constant 5.000000e-01 : f32
    %38 = vector.broadcast %cst_18 : f32 to vector<1x128xf32>
    %39 = arith.addf %37, %38 : vector<1x128xf32>
    %40 = arith.mulf %29, %9 : vector<1x128xf32>
    %41 = arith.mulf %21, %31 : vector<1x128xf32>
    %42 = arith.addf %40, %41 : vector<1x128xf32>
    %43 = math.tanh %42 : vector<1x128xf32>
    %44 = arith.mulf %39, %43 : vector<1x128xf32>
    %45 = vector.extract_strided_slice %6 {offsets = [1, 0], sizes = [1, 512], strides = [1, 1]} : vector<8x512xf32> to vector<1x512xf32>
    %46 = arith.truncf %44 : vector<1x128xf32> to vector<1x128xbf16>
    %cst_19 = arith.constant dense<0.000000e+00> : vector<1x512xf32>
    %47 = tpu.matmul %46, %7, %cst_19 {dimension_numbers = #tpu.dot_dimension_numbers<[1], [0], [0], [1], [0, 0, 1, 1], [], []>} : vector<1x128xbf16>, vector<128x512xbf16>, vector<1x512xf32> -> vector<1x512xf32>
    %48 = arith.addf %45, %47 : vector<1x512xf32>
    %49 = vector.extract_strided_slice %48 {offsets = [0, 0], sizes = [1, 128], strides = [1, 1]} : vector<1x512xf32> to vector<1x128xf32>
    %cst_20 = arith.constant 5.000000e-01 : f32
    %50 = vector.broadcast %cst_20 : f32 to vector<1x128xf32>
    %51 = arith.mulf %50, %49 : vector<1x128xf32>
    %52 = math.tanh %51 : vector<1x128xf32>
    %cst_21 = arith.constant 5.000000e-01 : f32
    %53 = vector.broadcast %cst_21 : f32 to vector<1x128xf32>
    %54 = arith.mulf %53, %52 : vector<1x128xf32>
    %cst_22 = arith.constant 5.000000e-01 : f32
    %55 = vector.broadcast %cst_22 : f32 to vector<1x128xf32>
    %56 = arith.addf %54, %55 : vector<1x128xf32>
    %57 = vector.extract_strided_slice %48 {offsets = [0, 128], sizes = [1, 128], strides = [1, 1]} : vector<1x512xf32> to vector<1x128xf32>
    %cst_23 = arith.constant 5.000000e-01 : f32
    %58 = vector.broadcast %cst_23 : f32 to vector<1x128xf32>
    %59 = arith.mulf %58, %57 : vector<1x128xf32>
    %60 = math.tanh %59 : vector<1x128xf32>
    %cst_24 = arith.constant 5.000000e-01 : f32
    %61 = vector.broadcast %cst_24 : f32 to vector<1x128xf32>
    %62 = arith.mulf %61, %60 : vector<1x128xf32>
    %cst_25 = arith.constant 5.000000e-01 : f32
    %63 = vector.broadcast %cst_25 : f32 to vector<1x128xf32>
    %64 = arith.addf %62, %63 : vector<1x128xf32>
    %65 = vector.extract_strided_slice %48 {offsets = [0, 256], sizes = [1, 128], strides = [1, 1]} : vector<1x512xf32> to vector<1x128xf32>
    %66 = math.tanh %65 : vector<1x128xf32>
    %67 = vector.extract_strided_slice %48 {offsets = [0, 384], sizes = [1, 128], strides = [1, 1]} : vector<1x512xf32> to vector<1x128xf32>
    %cst_26 = arith.constant 5.000000e-01 : f32
    %68 = vector.broadcast %cst_26 : f32 to vector<1x128xf32>
    %69 = arith.mulf %68, %67 : vector<1x128xf32>
    %70 = math.tanh %69 : vector<1x128xf32>
    %cst_27 = arith.constant 5.000000e-01 : f32
    %71 = vector.broadcast %cst_27 : f32 to vector<1x128xf32>
    %72 = arith.mulf %71, %70 : vector<1x128xf32>
    %cst_28 = arith.constant 5.000000e-01 : f32
    %73 = vector.broadcast %cst_28 : f32 to vector<1x128xf32>
    %74 = arith.addf %72, %73 : vector<1x128xf32>
    %75 = arith.mulf %64, %42 : vector<1x128xf32>
    %76 = arith.mulf %56, %66 : vector<1x128xf32>
    %77 = arith.addf %75, %76 : vector<1x128xf32>
    %78 = math.tanh %77 : vector<1x128xf32>
    %79 = arith.mulf %74, %78 : vector<1x128xf32>
    %80 = vector.extract_strided_slice %6 {offsets = [2, 0], sizes = [1, 512], strides = [1, 1]} : vector<8x512xf32> to vector<1x512xf32>
    %81 = arith.truncf %79 : vector<1x128xf32> to vector<1x128xbf16>
    %cst_29 = arith.constant dense<0.000000e+00> : vector<1x512xf32>
    %82 = tpu.matmul %81, %7, %cst_29 {dimension_numbers = #tpu.dot_dimension_numbers<[1], [0], [0], [1], [0, 0, 1, 1], [], []>} : vector<1x128xbf16>, vector<128x512xbf16>, vector<1x512xf32> -> vector<1x512xf32>
    %83 = arith.addf %80, %82 : vector<1x512xf32>
    %84 = vector.extract_strided_slice %83 {offsets = [0, 0], sizes = [1, 128], strides = [1, 1]} : vector<1x512xf32> to vector<1x128xf32>
    %cst_30 = arith.constant 5.000000e-01 : f32
    %85 = vector.broadcast %cst_30 : f32 to vector<1x128xf32>
    %86 = arith.mulf %85, %84 : vector<1x128xf32>
    %87 = math.tanh %86 : vector<1x128xf32>
    %cst_31 = arith.constant 5.000000e-01 : f32
    %88 = vector.broadcast %cst_31 : f32 to vector<1x128xf32>
    %89 = arith.mulf %88, %87 : vector<1x128xf32>
    %cst_32 = arith.constant 5.000000e-01 : f32
    %90 = vector.broadcast %cst_32 : f32 to vector<1x128xf32>
    %91 = arith.addf %89, %90 : vector<1x128xf32>
    %92 = vector.extract_strided_slice %83 {offsets = [0, 128], sizes = [1, 128], strides = [1, 1]} : vector<1x512xf32> to vector<1x128xf32>
    %cst_33 = arith.constant 5.000000e-01 : f32
    %93 = vector.broadcast %cst_33 : f32 to vector<1x128xf32>
    %94 = arith.mulf %93, %92 : vector<1x128xf32>
    %95 = math.tanh %94 : vector<1x128xf32>
    %cst_34 = arith.constant 5.000000e-01 : f32
    %96 = vector.broadcast %cst_34 : f32 to vector<1x128xf32>
    %97 = arith.mulf %96, %95 : vector<1x128xf32>
    %cst_35 = arith.constant 5.000000e-01 : f32
    %98 = vector.broadcast %cst_35 : f32 to vector<1x128xf32>
    %99 = arith.addf %97, %98 : vector<1x128xf32>
    %100 = vector.extract_strided_slice %83 {offsets = [0, 256], sizes = [1, 128], strides = [1, 1]} : vector<1x512xf32> to vector<1x128xf32>
    %101 = math.tanh %100 : vector<1x128xf32>
    %102 = vector.extract_strided_slice %83 {offsets = [0, 384], sizes = [1, 128], strides = [1, 1]} : vector<1x512xf32> to vector<1x128xf32>
    %cst_36 = arith.constant 5.000000e-01 : f32
    %103 = vector.broadcast %cst_36 : f32 to vector<1x128xf32>
    %104 = arith.mulf %103, %102 : vector<1x128xf32>
    %105 = math.tanh %104 : vector<1x128xf32>
    %cst_37 = arith.constant 5.000000e-01 : f32
    %106 = vector.broadcast %cst_37 : f32 to vector<1x128xf32>
    %107 = arith.mulf %106, %105 : vector<1x128xf32>
    %cst_38 = arith.constant 5.000000e-01 : f32
    %108 = vector.broadcast %cst_38 : f32 to vector<1x128xf32>
    %109 = arith.addf %107, %108 : vector<1x128xf32>
    %110 = arith.mulf %99, %77 : vector<1x128xf32>
    %111 = arith.mulf %91, %101 : vector<1x128xf32>
    %112 = arith.addf %110, %111 : vector<1x128xf32>
    %113 = math.tanh %112 : vector<1x128xf32>
    %114 = arith.mulf %109, %113 : vector<1x128xf32>
    %115 = vector.extract_strided_slice %6 {offsets = [3, 0], sizes = [1, 512], strides = [1, 1]} : vector<8x512xf32> to vector<1x512xf32>
    %116 = arith.truncf %114 : vector<1x128xf32> to vector<1x128xbf16>
    %cst_39 = arith.constant dense<0.000000e+00> : vector<1x512xf32>
    %117 = tpu.matmul %116, %7, %cst_39 {dimension_numbers = #tpu.dot_dimension_numbers<[1], [0], [0], [1], [0, 0, 1, 1], [], []>} : vector<1x128xbf16>, vector<128x512xbf16>, vector<1x512xf32> -> vector<1x512xf32>
    %118 = arith.addf %115, %117 : vector<1x512xf32>
    %119 = vector.extract_strided_slice %118 {offsets = [0, 0], sizes = [1, 128], strides = [1, 1]} : vector<1x512xf32> to vector<1x128xf32>
    %cst_40 = arith.constant 5.000000e-01 : f32
    %120 = vector.broadcast %cst_40 : f32 to vector<1x128xf32>
    %121 = arith.mulf %120, %119 : vector<1x128xf32>
    %122 = math.tanh %121 : vector<1x128xf32>
    %cst_41 = arith.constant 5.000000e-01 : f32
    %123 = vector.broadcast %cst_41 : f32 to vector<1x128xf32>
    %124 = arith.mulf %123, %122 : vector<1x128xf32>
    %cst_42 = arith.constant 5.000000e-01 : f32
    %125 = vector.broadcast %cst_42 : f32 to vector<1x128xf32>
    %126 = arith.addf %124, %125 : vector<1x128xf32>
    %127 = vector.extract_strided_slice %118 {offsets = [0, 128], sizes = [1, 128], strides = [1, 1]} : vector<1x512xf32> to vector<1x128xf32>
    %cst_43 = arith.constant 5.000000e-01 : f32
    %128 = vector.broadcast %cst_43 : f32 to vector<1x128xf32>
    %129 = arith.mulf %128, %127 : vector<1x128xf32>
    %130 = math.tanh %129 : vector<1x128xf32>
    %cst_44 = arith.constant 5.000000e-01 : f32
    %131 = vector.broadcast %cst_44 : f32 to vector<1x128xf32>
    %132 = arith.mulf %131, %130 : vector<1x128xf32>
    %cst_45 = arith.constant 5.000000e-01 : f32
    %133 = vector.broadcast %cst_45 : f32 to vector<1x128xf32>
    %134 = arith.addf %132, %133 : vector<1x128xf32>
    %135 = vector.extract_strided_slice %118 {offsets = [0, 256], sizes = [1, 128], strides = [1, 1]} : vector<1x512xf32> to vector<1x128xf32>
    %136 = math.tanh %135 : vector<1x128xf32>
    %137 = vector.extract_strided_slice %118 {offsets = [0, 384], sizes = [1, 128], strides = [1, 1]} : vector<1x512xf32> to vector<1x128xf32>
    %cst_46 = arith.constant 5.000000e-01 : f32
    %138 = vector.broadcast %cst_46 : f32 to vector<1x128xf32>
    %139 = arith.mulf %138, %137 : vector<1x128xf32>
    %140 = math.tanh %139 : vector<1x128xf32>
    %cst_47 = arith.constant 5.000000e-01 : f32
    %141 = vector.broadcast %cst_47 : f32 to vector<1x128xf32>
    %142 = arith.mulf %141, %140 : vector<1x128xf32>
    %cst_48 = arith.constant 5.000000e-01 : f32
    %143 = vector.broadcast %cst_48 : f32 to vector<1x128xf32>
    %144 = arith.addf %142, %143 : vector<1x128xf32>
    %145 = arith.mulf %134, %112 : vector<1x128xf32>
    %146 = arith.mulf %126, %136 : vector<1x128xf32>
    %147 = arith.addf %145, %146 : vector<1x128xf32>
    %148 = math.tanh %147 : vector<1x128xf32>
    %149 = arith.mulf %144, %148 : vector<1x128xf32>
    %150 = vector.extract_strided_slice %6 {offsets = [4, 0], sizes = [1, 512], strides = [1, 1]} : vector<8x512xf32> to vector<1x512xf32>
    %151 = arith.truncf %149 : vector<1x128xf32> to vector<1x128xbf16>
    %cst_49 = arith.constant dense<0.000000e+00> : vector<1x512xf32>
    %152 = tpu.matmul %151, %7, %cst_49 {dimension_numbers = #tpu.dot_dimension_numbers<[1], [0], [0], [1], [0, 0, 1, 1], [], []>} : vector<1x128xbf16>, vector<128x512xbf16>, vector<1x512xf32> -> vector<1x512xf32>
    %153 = arith.addf %150, %152 : vector<1x512xf32>
    %154 = vector.extract_strided_slice %153 {offsets = [0, 0], sizes = [1, 128], strides = [1, 1]} : vector<1x512xf32> to vector<1x128xf32>
    %cst_50 = arith.constant 5.000000e-01 : f32
    %155 = vector.broadcast %cst_50 : f32 to vector<1x128xf32>
    %156 = arith.mulf %155, %154 : vector<1x128xf32>
    %157 = math.tanh %156 : vector<1x128xf32>
    %cst_51 = arith.constant 5.000000e-01 : f32
    %158 = vector.broadcast %cst_51 : f32 to vector<1x128xf32>
    %159 = arith.mulf %158, %157 : vector<1x128xf32>
    %cst_52 = arith.constant 5.000000e-01 : f32
    %160 = vector.broadcast %cst_52 : f32 to vector<1x128xf32>
    %161 = arith.addf %159, %160 : vector<1x128xf32>
    %162 = vector.extract_strided_slice %153 {offsets = [0, 128], sizes = [1, 128], strides = [1, 1]} : vector<1x512xf32> to vector<1x128xf32>
    %cst_53 = arith.constant 5.000000e-01 : f32
    %163 = vector.broadcast %cst_53 : f32 to vector<1x128xf32>
    %164 = arith.mulf %163, %162 : vector<1x128xf32>
    %165 = math.tanh %164 : vector<1x128xf32>
    %cst_54 = arith.constant 5.000000e-01 : f32
    %166 = vector.broadcast %cst_54 : f32 to vector<1x128xf32>
    %167 = arith.mulf %166, %165 : vector<1x128xf32>
    %cst_55 = arith.constant 5.000000e-01 : f32
    %168 = vector.broadcast %cst_55 : f32 to vector<1x128xf32>
    %169 = arith.addf %167, %168 : vector<1x128xf32>
    %170 = vector.extract_strided_slice %153 {offsets = [0, 256], sizes = [1, 128], strides = [1, 1]} : vector<1x512xf32> to vector<1x128xf32>
    %171 = math.tanh %170 : vector<1x128xf32>
    %172 = vector.extract_strided_slice %153 {offsets = [0, 384], sizes = [1, 128], strides = [1, 1]} : vector<1x512xf32> to vector<1x128xf32>
    %cst_56 = arith.constant 5.000000e-01 : f32
    %173 = vector.broadcast %cst_56 : f32 to vector<1x128xf32>
    %174 = arith.mulf %173, %172 : vector<1x128xf32>
    %175 = math.tanh %174 : vector<1x128xf32>
    %cst_57 = arith.constant 5.000000e-01 : f32
    %176 = vector.broadcast %cst_57 : f32 to vector<1x128xf32>
    %177 = arith.mulf %176, %175 : vector<1x128xf32>
    %cst_58 = arith.constant 5.000000e-01 : f32
    %178 = vector.broadcast %cst_58 : f32 to vector<1x128xf32>
    %179 = arith.addf %177, %178 : vector<1x128xf32>
    %180 = arith.mulf %169, %147 : vector<1x128xf32>
    %181 = arith.mulf %161, %171 : vector<1x128xf32>
    %182 = arith.addf %180, %181 : vector<1x128xf32>
    %183 = math.tanh %182 : vector<1x128xf32>
    %184 = arith.mulf %179, %183 : vector<1x128xf32>
    %185 = vector.extract_strided_slice %6 {offsets = [5, 0], sizes = [1, 512], strides = [1, 1]} : vector<8x512xf32> to vector<1x512xf32>
    %186 = arith.truncf %184 : vector<1x128xf32> to vector<1x128xbf16>
    %cst_59 = arith.constant dense<0.000000e+00> : vector<1x512xf32>
    %187 = tpu.matmul %186, %7, %cst_59 {dimension_numbers = #tpu.dot_dimension_numbers<[1], [0], [0], [1], [0, 0, 1, 1], [], []>} : vector<1x128xbf16>, vector<128x512xbf16>, vector<1x512xf32> -> vector<1x512xf32>
    %188 = arith.addf %185, %187 : vector<1x512xf32>
    %189 = vector.extract_strided_slice %188 {offsets = [0, 0], sizes = [1, 128], strides = [1, 1]} : vector<1x512xf32> to vector<1x128xf32>
    %cst_60 = arith.constant 5.000000e-01 : f32
    %190 = vector.broadcast %cst_60 : f32 to vector<1x128xf32>
    %191 = arith.mulf %190, %189 : vector<1x128xf32>
    %192 = math.tanh %191 : vector<1x128xf32>
    %cst_61 = arith.constant 5.000000e-01 : f32
    %193 = vector.broadcast %cst_61 : f32 to vector<1x128xf32>
    %194 = arith.mulf %193, %192 : vector<1x128xf32>
    %cst_62 = arith.constant 5.000000e-01 : f32
    %195 = vector.broadcast %cst_62 : f32 to vector<1x128xf32>
    %196 = arith.addf %194, %195 : vector<1x128xf32>
    %197 = vector.extract_strided_slice %188 {offsets = [0, 128], sizes = [1, 128], strides = [1, 1]} : vector<1x512xf32> to vector<1x128xf32>
    %cst_63 = arith.constant 5.000000e-01 : f32
    %198 = vector.broadcast %cst_63 : f32 to vector<1x128xf32>
    %199 = arith.mulf %198, %197 : vector<1x128xf32>
    %200 = math.tanh %199 : vector<1x128xf32>
    %cst_64 = arith.constant 5.000000e-01 : f32
    %201 = vector.broadcast %cst_64 : f32 to vector<1x128xf32>
    %202 = arith.mulf %201, %200 : vector<1x128xf32>
    %cst_65 = arith.constant 5.000000e-01 : f32
    %203 = vector.broadcast %cst_65 : f32 to vector<1x128xf32>
    %204 = arith.addf %202, %203 : vector<1x128xf32>
    %205 = vector.extract_strided_slice %188 {offsets = [0, 256], sizes = [1, 128], strides = [1, 1]} : vector<1x512xf32> to vector<1x128xf32>
    %206 = math.tanh %205 : vector<1x128xf32>
    %207 = vector.extract_strided_slice %188 {offsets = [0, 384], sizes = [1, 128], strides = [1, 1]} : vector<1x512xf32> to vector<1x128xf32>
    %cst_66 = arith.constant 5.000000e-01 : f32
    %208 = vector.broadcast %cst_66 : f32 to vector<1x128xf32>
    %209 = arith.mulf %208, %207 : vector<1x128xf32>
    %210 = math.tanh %209 : vector<1x128xf32>
    %cst_67 = arith.constant 5.000000e-01 : f32
    %211 = vector.broadcast %cst_67 : f32 to vector<1x128xf32>
    %212 = arith.mulf %211, %210 : vector<1x128xf32>
    %cst_68 = arith.constant 5.000000e-01 : f32
    %213 = vector.broadcast %cst_68 : f32 to vector<1x128xf32>
    %214 = arith.addf %212, %213 : vector<1x128xf32>
    %215 = arith.mulf %204, %182 : vector<1x128xf32>
    %216 = arith.mulf %196, %206 : vector<1x128xf32>
    %217 = arith.addf %215, %216 : vector<1x128xf32>
    %218 = math.tanh %217 : vector<1x128xf32>
    %219 = arith.mulf %214, %218 : vector<1x128xf32>
    %220 = vector.extract_strided_slice %6 {offsets = [6, 0], sizes = [1, 512], strides = [1, 1]} : vector<8x512xf32> to vector<1x512xf32>
    %221 = arith.truncf %219 : vector<1x128xf32> to vector<1x128xbf16>
    %cst_69 = arith.constant dense<0.000000e+00> : vector<1x512xf32>
    %222 = tpu.matmul %221, %7, %cst_69 {dimension_numbers = #tpu.dot_dimension_numbers<[1], [0], [0], [1], [0, 0, 1, 1], [], []>} : vector<1x128xbf16>, vector<128x512xbf16>, vector<1x512xf32> -> vector<1x512xf32>
    %223 = arith.addf %220, %222 : vector<1x512xf32>
    %224 = vector.extract_strided_slice %223 {offsets = [0, 0], sizes = [1, 128], strides = [1, 1]} : vector<1x512xf32> to vector<1x128xf32>
    %cst_70 = arith.constant 5.000000e-01 : f32
    %225 = vector.broadcast %cst_70 : f32 to vector<1x128xf32>
    %226 = arith.mulf %225, %224 : vector<1x128xf32>
    %227 = math.tanh %226 : vector<1x128xf32>
    %cst_71 = arith.constant 5.000000e-01 : f32
    %228 = vector.broadcast %cst_71 : f32 to vector<1x128xf32>
    %229 = arith.mulf %228, %227 : vector<1x128xf32>
    %cst_72 = arith.constant 5.000000e-01 : f32
    %230 = vector.broadcast %cst_72 : f32 to vector<1x128xf32>
    %231 = arith.addf %229, %230 : vector<1x128xf32>
    %232 = vector.extract_strided_slice %223 {offsets = [0, 128], sizes = [1, 128], strides = [1, 1]} : vector<1x512xf32> to vector<1x128xf32>
    %cst_73 = arith.constant 5.000000e-01 : f32
    %233 = vector.broadcast %cst_73 : f32 to vector<1x128xf32>
    %234 = arith.mulf %233, %232 : vector<1x128xf32>
    %235 = math.tanh %234 : vector<1x128xf32>
    %cst_74 = arith.constant 5.000000e-01 : f32
    %236 = vector.broadcast %cst_74 : f32 to vector<1x128xf32>
    %237 = arith.mulf %236, %235 : vector<1x128xf32>
    %cst_75 = arith.constant 5.000000e-01 : f32
    %238 = vector.broadcast %cst_75 : f32 to vector<1x128xf32>
    %239 = arith.addf %237, %238 : vector<1x128xf32>
    %240 = vector.extract_strided_slice %223 {offsets = [0, 256], sizes = [1, 128], strides = [1, 1]} : vector<1x512xf32> to vector<1x128xf32>
    %241 = math.tanh %240 : vector<1x128xf32>
    %242 = vector.extract_strided_slice %223 {offsets = [0, 384], sizes = [1, 128], strides = [1, 1]} : vector<1x512xf32> to vector<1x128xf32>
    %cst_76 = arith.constant 5.000000e-01 : f32
    %243 = vector.broadcast %cst_76 : f32 to vector<1x128xf32>
    %244 = arith.mulf %243, %242 : vector<1x128xf32>
    %245 = math.tanh %244 : vector<1x128xf32>
    %cst_77 = arith.constant 5.000000e-01 : f32
    %246 = vector.broadcast %cst_77 : f32 to vector<1x128xf32>
    %247 = arith.mulf %246, %245 : vector<1x128xf32>
    %cst_78 = arith.constant 5.000000e-01 : f32
    %248 = vector.broadcast %cst_78 : f32 to vector<1x128xf32>
    %249 = arith.addf %247, %248 : vector<1x128xf32>
    %250 = arith.mulf %239, %217 : vector<1x128xf32>
    %251 = arith.mulf %231, %241 : vector<1x128xf32>
    %252 = arith.addf %250, %251 : vector<1x128xf32>
    %253 = math.tanh %252 : vector<1x128xf32>
    %254 = arith.mulf %249, %253 : vector<1x128xf32>
    %255 = vector.extract_strided_slice %6 {offsets = [7, 0], sizes = [1, 512], strides = [1, 1]} : vector<8x512xf32> to vector<1x512xf32>
    %256 = arith.truncf %254 : vector<1x128xf32> to vector<1x128xbf16>
    %cst_79 = arith.constant dense<0.000000e+00> : vector<1x512xf32>
    %257 = tpu.matmul %256, %7, %cst_79 {dimension_numbers = #tpu.dot_dimension_numbers<[1], [0], [0], [1], [0, 0, 1, 1], [], []>} : vector<1x128xbf16>, vector<128x512xbf16>, vector<1x512xf32> -> vector<1x512xf32>
    %258 = arith.addf %255, %257 : vector<1x512xf32>
    %259 = vector.extract_strided_slice %258 {offsets = [0, 0], sizes = [1, 128], strides = [1, 1]} : vector<1x512xf32> to vector<1x128xf32>
    %cst_80 = arith.constant 5.000000e-01 : f32
    %260 = vector.broadcast %cst_80 : f32 to vector<1x128xf32>
    %261 = arith.mulf %260, %259 : vector<1x128xf32>
    %262 = math.tanh %261 : vector<1x128xf32>
    %cst_81 = arith.constant 5.000000e-01 : f32
    %263 = vector.broadcast %cst_81 : f32 to vector<1x128xf32>
    %264 = arith.mulf %263, %262 : vector<1x128xf32>
    %cst_82 = arith.constant 5.000000e-01 : f32
    %265 = vector.broadcast %cst_82 : f32 to vector<1x128xf32>
    %266 = arith.addf %264, %265 : vector<1x128xf32>
    %267 = vector.extract_strided_slice %258 {offsets = [0, 128], sizes = [1, 128], strides = [1, 1]} : vector<1x512xf32> to vector<1x128xf32>
    %cst_83 = arith.constant 5.000000e-01 : f32
    %268 = vector.broadcast %cst_83 : f32 to vector<1x128xf32>
    %269 = arith.mulf %268, %267 : vector<1x128xf32>
    %270 = math.tanh %269 : vector<1x128xf32>
    %cst_84 = arith.constant 5.000000e-01 : f32
    %271 = vector.broadcast %cst_84 : f32 to vector<1x128xf32>
    %272 = arith.mulf %271, %270 : vector<1x128xf32>
    %cst_85 = arith.constant 5.000000e-01 : f32
    %273 = vector.broadcast %cst_85 : f32 to vector<1x128xf32>
    %274 = arith.addf %272, %273 : vector<1x128xf32>
    %275 = vector.extract_strided_slice %258 {offsets = [0, 256], sizes = [1, 128], strides = [1, 1]} : vector<1x512xf32> to vector<1x128xf32>
    %276 = math.tanh %275 : vector<1x128xf32>
    %277 = vector.extract_strided_slice %258 {offsets = [0, 384], sizes = [1, 128], strides = [1, 1]} : vector<1x512xf32> to vector<1x128xf32>
    %cst_86 = arith.constant 5.000000e-01 : f32
    %278 = vector.broadcast %cst_86 : f32 to vector<1x128xf32>
    %279 = arith.mulf %278, %277 : vector<1x128xf32>
    %280 = math.tanh %279 : vector<1x128xf32>
    %cst_87 = arith.constant 5.000000e-01 : f32
    %281 = vector.broadcast %cst_87 : f32 to vector<1x128xf32>
    %282 = arith.mulf %281, %280 : vector<1x128xf32>
    %cst_88 = arith.constant 5.000000e-01 : f32
    %283 = vector.broadcast %cst_88 : f32 to vector<1x128xf32>
    %284 = arith.addf %282, %283 : vector<1x128xf32>
    %285 = arith.mulf %274, %252 : vector<1x128xf32>
    %286 = arith.mulf %266, %276 : vector<1x128xf32>
    %287 = arith.addf %285, %286 : vector<1x128xf32>
    %288 = math.tanh %287 : vector<1x128xf32>
    %289 = arith.mulf %284, %288 : vector<1x128xf32>
    %290 = arith.truncf %289 : vector<1x128xf32> to vector<1x128xbf16>
    %c0_89 = arith.constant 0 : index
    %c0_90 = arith.constant 0 : index
    %291 = vector.load %arg4[%c0_89, %c0_90] : memref<128x128xbf16, #tpu.memory_space<vmem>>, vector<128x128xbf16>
    %cst_91 = arith.constant dense<0.000000e+00> : vector<1x128xf32>
    %292 = tpu.matmul %290, %291, %cst_91 {dimension_numbers = #tpu.dot_dimension_numbers<[1], [0], [0], [1], [0, 0, 1, 1], [], []>} : vector<1x128xbf16>, vector<128x128xbf16>, vector<1x128xf32> -> vector<1x128xf32>
    %c0_92 = arith.constant 0 : index
    %c0_93 = arith.constant 0 : index
    %293 = vector.load %arg5[%c0_92, %c0_93] : memref<1x128xf32, #tpu.memory_space<vmem>>, vector<1x128xf32>
    %294 = arith.addf %292, %293 : vector<1x128xf32>
    %c0_94 = arith.constant 0 : index
    %c0_95 = arith.constant 0 : index
    %295 = vector.load %arg6[%c0_94, %c0_95] : memref<1x128xf32, #tpu.memory_space<vmem>>, vector<1x128xf32>
    tpu.vector_store %arg6[%c0_94, %c0_95], %294 {strides = array<i32>} : memref<1x128xf32, #tpu.memory_space<vmem>>, vector<1x128xf32>,
    return
  }
}

</mosaic_0001>

<llo_original>
// kernel: tpu_custom_call.1
$region0: #{tpu_custom_call.1}
  #allocation0 [shape = 'u32[]', space=smem, size = 0x4, offset = 0x4, fixed_abs, tag = 'smem constant byte address 0x4 - core index']
  #allocation1 [shape = 'u32[144,128]{1,0:T(1,128)}', space=vmem, size = 0x12000, scoped, tag = 'internal scratch']
  %s0 = inlined_call_operand.vmem [shape: f32[8,4], index: 0, kind: input, shape index: {}]
  %s1 = inlined_call_operand.vmem [shape: bf16[4,512], index: 1, kind: input, shape index: {}]
  %s2 = inlined_call_operand.hbm [shape: bf16[128,512], index: 2, kind: input, shape index: {}]
  %s3 = inlined_call_operand.vmem [shape: f32[1,512], index: 3, kind: input, shape index: {}]
  %s4 = inlined_call_operand.hbm [shape: bf16[128,128], index: 4, kind: input, shape index: {}]
  %s5 = inlined_call_operand.vmem [shape: f32[1,128], index: 5, kind: input, shape index: {}]
  %s6 = inlined_call_operand.hbm [shape: f32[1,128], index: 6, kind: output, shape index: {}]
  %s7 = sld [smem:[#allocation0]]
  $region42: #{tpu_custom_call.1} parent=0
    _
  %s9 = ssub.s32 1, %s7
  %s10 = scalar_select 0, %s9, %s7
  $region1: #{tpu_custom_call.1} parent=0
    #allocation2 [shape = 'u8[131072]{0}', space=vmem, size = 0x20000, scoped, tag = 'input window, operand 2, single buffered']
    #allocation3 [shape = 's32[1]{0}', space=sflag, size = 0x4, scoped, tag = 'scoped memory for tpu_custom_call.1']
    #allocation4 [shape = 's32[1]{0}', space=sflag, size = 0x4, scoped, tag = 'scoped memory for tpu_custom_call.1']
    #allocation5 [shape = 'u8[32768]{0}', space=vmem, size = 0x8000, scoped, tag = 'input window, operand 4, single buffered']
    #allocation6 [shape = 's32[1]{0}', space=sflag, size = 0x4, scoped, tag = 'scoped memory for tpu_custom_call.1']
    #allocation7 [shape = 'u8[512]{0}', space=vmem, size = 0x400, scoped, tag = 'output window, operand 0, single buffered']
    %11 = vsyncpa [#allocation3], 0
    %12 = vsyncpa [#allocation6], 0
    %13 = vsyncpa [#allocation4], 0
    // Predicated region
    $region2: #{tpu_custom_call.1} parent=1 // pred_check
      _
    $region3: #{tpu_custom_call.1} parent=1 // pred_check_branch
      %15 = sbr.rel (0) target = $region5
    $region4: #{tpu_custom_call.1} parent=1 // pred_region
      _
    $region5: #{tpu_custom_call.1} parent=1 // pred_fallthru
      _
    // Predicated region
    $region6: #{tpu_custom_call.1} parent=1 // pred_check
      _
    $region7: #{tpu_custom_call.1} parent=1 // pred_check_branch
      %17 = sbr.rel (0) target = $region9
    $region8: #{tpu_custom_call.1} parent=1 // pred_region
      _
    $region9: #{tpu_custom_call.1} parent=1 // pred_fallthru
      _
    // Predicated region
    $region10: #{tpu_custom_call.1} parent=1 // pred_check
      _
    $region11: #{tpu_custom_call.1} parent=1 // pred_check_branch
      %19 = sbr.rel (0) target = $region13
    $region12: #{tpu_custom_call.1} parent=1 // pred_region
      %s21 = ssub.s32 4096, 4096
      %22 = vsyncadd [#allocation3], %s21
      %s23 = sshll.u32 [#allocation2], 4
      %s24 = int_to_ptr.vmem [resolvable:$true] %s23
      %29 = dma.hbm_to_vmem [thread:$0]  %s2, 4096, %s24, [#allocation3], 256, 256, 16
    $region13: #{tpu_custom_call.1} parent=1 // pred_fallthru
      _
    // Predicated region
    $region14: #{tpu_custom_call.1} parent=1 // pred_check
      _
    $region15: #{tpu_custom_call.1} parent=1 // pred_check_branch
      %31 = sbr.rel (0) target = $region17
    $region16: #{tpu_custom_call.1} parent=1 // pred_region
      _
    $region17: #{tpu_custom_call.1} parent=1 // pred_fallthru
      _
    // Predicated region
    $region18: #{tpu_custom_call.1} parent=1 // pred_check
      _
    $region19: #{tpu_custom_call.1} parent=1 // pred_check_branch
      %33 = sbr.rel (0) target = $region21
    $region20: #{tpu_custom_call.1} parent=1 // pred_region
      %s35 = ssub.s32 1024, 1024
      %36 = vsyncadd [#allocation6], %s35
      %s37 = sshll.u32 [#allocation5], 4
      %s38 = int_to_ptr.vmem [resolvable:$true] %s37
      %43 = dma.hbm_to_vmem [thread:$0]  %s4, 1024, %s38, [#allocation6], 64, 64, 4
    $region21: #{tpu_custom_call.1} parent=1 // pred_fallthru
      _
    // Predicated region
    $region22: #{tpu_custom_call.1} parent=1 // pred_check
      _
    $region23: #{tpu_custom_call.1} parent=1 // pred_check_branch
      %45 = sbr.rel (0) target = $region25
    $region24: #{tpu_custom_call.1} parent=1 // pred_region
      _
    $region25: #{tpu_custom_call.1} parent=1 // pred_fallthru
      _
    // Predicated region
    $region26: #{tpu_custom_call.1} parent=1 // pred_check
      _
    $region27: #{tpu_custom_call.1} parent=1 // pred_check_branch
      %47 = sbr.rel (0) target = $region29
    $region28: #{tpu_custom_call.1} parent=1 // pred_region
      %48 = dma.done [#allocation3], 4096
    $region29: #{tpu_custom_call.1} parent=1 // pred_fallthru
      _
    // Predicated region
    $region30: #{tpu_custom_call.1} parent=1 // pred_check
      _
    $region31: #{tpu_custom_call.1} parent=1 // pred_check_branch
      %50 = sbr.rel (0) target = $region33
    $region32: #{tpu_custom_call.1} parent=1 // pred_region
      %51 = dma.done [#allocation6], 1024
    $region33: #{tpu_custom_call.1} parent=1 // pred_fallthru
      _
    %v53 = vld [vmem:[%s0] sm:$0xff]
    %v54 = vpack.c.bf16 %v53, %v53
    %v55 = vld [vmem:[%s1] sm:$0xff]
    %v56 = vld [vmem:[%s3] sm:$0xf]
    %v58 = vlaneseq
    %v59 = vshrl.u32 %v58, 7
    %v60 = vsub.s32 0, %v59
    %v61 = vrot.slane %v56, %v60
    %v62 = vlaneseq
    %v63 = vshrl.u32 %v62, 7
    %v64 = vsub.s32 1, %v63
    %v65 = vrot.slane %v56, %v64
    %v66 = vlaneseq
    %v67 = vshrl.u32 %v66, 7
    %v68 = vsub.s32 2, %v67
    %v69 = vrot.slane %v56, %v68
    %v70 = vlaneseq
    %v71 = vshrl.u32 %v70, 7
    %v72 = vsub.s32 3, %v71
    %v73 = vrot.slane %v56, %v72
    %v79 = vcombine.high %v55, %v55
    %v81 = vunpack.c.l.s4 1983009808
    %v82 = vunpack.c.0.s8 %v81
    %v83 = vlaneseq
    %v84 = vshrl.u32 %v83, 7
    %v85 = vsub.s32 %v82, %v84
    %v86 = vrot.slane %v55, %v85
    %v88 = vunpack.c.l.s4 1983009808
    %v89 = vunpack.c.0.s8 %v88
    %v90 = vlaneseq
    %v91 = vshrl.u32 %v90, 7
    %v92 = vsub.s32 %v89, %v91
    %v93 = vrot.slane %v79, %v92
    %v94 = vcombine.high %v86, %v86
    %v95 = vcombine.high %v93, %v93
    %vm96 = vcmask 31744
    %v98 = vsel %vm96, %v54, 0
    %vm100 = vcmask 1041408
    %v102 = vsel %vm100, %v86, 0
    %v105 = vsel %vm100, %v94, 0
    %v108 = vsel %vm100, %v93, 0
    %v111 = vsel %vm100, %v95, 0
    %113 = vmatprep.subr.bf16.mxu0 %v105
    %114 = vmatpush1.bf16.msra.mxu0 %v102
    %115 = vmatprep.subr.bf16.mxu0 0
    %116 = vmatpush1.bf16.msra.mxu0 0
    %117 = vmatprep.subr.bf16.mxu0 0
    %118 = vmatpush1.bf16.msra.mxu0 0
    %119 = vmatprep.subr.bf16.mxu0 0
    %120 = vmatpush1.bf16.msra.mxu0 0
    %121 = vmatprep.subr.bf16.mxu0 0
    %122 = vmatpush1.bf16.msra.mxu0 0
    %123 = vmatprep.subr.bf16.mxu0 0
    %124 = vmatpush1.bf16.msra.mxu0 0
    %125 = vmatprep.subr.bf16.mxu0 0
    %126 = vmatpush1.bf16.msra.mxu0 0
    %127 = vmatprep.subr.bf16.mxu0 0
    %128 = vmatpush1.bf16.msra.mxu0 0
    %129 = vmatprep.subr.bf16.mxu0 0
    %130 = vmatpush1.bf16.msra.mxu0 0
    %131 = vmatprep.subr.bf16.mxu0 0
    %132 = vmatpush1.bf16.msra.mxu0 0
    %133 = vmatprep.subr.bf16.mxu0 0
    %134 = vmatpush1.bf16.msra.mxu0 0
    %135 = vmatprep.subr.bf16.mxu0 0
    %136 = vmatpush1.bf16.msra.mxu0 0
    %137 = vmatprep.subr.bf16.mxu0 0
    %138 = vmatpush1.bf16.msra.mxu0 0
    %139 = vmatprep.subr.bf16.mxu0 0
    %140 = vmatpush1.bf16.msra.mxu0 0
    %141 = vmatprep.subr.bf16.mxu0 0
    %142 = vmatpush1.bf16.msra.mxu0 0
    %143 = vmatprep.subr.bf16.mxu0 0
    %144 = vmatpush1.bf16.msra.mxu0 0
    %145 = vmatprep.mubr.bf16.mxu0 0
    %146 = vmatmul.mubr.bf16.gmra.mrb[0].mxu0 %v98
    %v147 = vpop.f32.mrb[0].mxu0
    %v148 = vadd.f32 %v61, %v147
    %v149 = vpop.f32.mrb[0].mxu0
    %v150 = vadd.f32 %v65, %v149
    %v151 = vpop.f32.mrb[0].mxu0
    %v152 = vpop.f32.mrb[0].mxu0
    %153 = vdwg.mxu0
    %154 = vmatprep.subr.bf16.mxu0 %v111
    %155 = vmatpush1.bf16.msra.mxu0 %v108
    %156 = vmatprep.subr.bf16.mxu0 0
    %157 = vmatpush1.bf16.msra.mxu0 0
    %158 = vmatprep.subr.bf16.mxu0 0
    %159 = vmatpush1.bf16.msra.mxu0 0
    %160 = vmatprep.subr.bf16.mxu0 0
    %161 = vmatpush1.bf16.msra.mxu0 0
    %162 = vmatprep.subr.bf16.mxu0 0
    %163 = vmatpush1.bf16.msra.mxu0 0
    %164 = vmatprep.subr.bf16.mxu0 0
    %165 = vmatpush1.bf16.msra.mxu0 0
    %166 = vmatprep.subr.bf16.mxu0 0
    %167 = vmatpush1.bf16.msra.mxu0 0
    %168 = vmatprep.subr.bf16.mxu0 0
    %169 = vmatpush1.bf16.msra.mxu0 0
    %170 = vmatprep.subr.bf16.mxu0 0
    %171 = vmatpush1.bf16.msra.mxu0 0
    %172 = vmatprep.subr.bf16.mxu0 0
    %173 = vmatpush1.bf16.msra.mxu0 0
    %174 = vmatprep.subr.bf16.mxu0 0
    %175 = vmatpush1.bf16.msra.mxu0 0
    %176 = vmatprep.subr.bf16.mxu0 0
    %177 = vmatpush1.bf16.msra.mxu0 0
    %178 = vmatprep.subr.bf16.mxu0 0
    %179 = vmatpush1.bf16.msra.mxu0 0
    %180 = vmatprep.subr.bf16.mxu0 0
    %181 = vmatpush1.bf16.msra.mxu0 0
    %182 = vmatprep.subr.bf16.mxu0 0
    %183 = vmatpush1.bf16.msra.mxu0 0
    %184 = vmatprep.subr.bf16.mxu0 0
    %185 = vmatpush1.bf16.msra.mxu0 0
    %186 = vmatprep.mubr.bf16.mxu0 0
    %187 = vmatmul.mubr.bf16.gmra.mrb[0].mxu0 %v98
    %v188 = vpop.f32.mrb[0].mxu0
    %v189 = vadd.f32 %v69, %v188
    %v190 = vpop.f32.mrb[0].mxu0
    %v191 = vadd.f32 %v73, %v190
    %v192 = vpop.f32.mrb[0].mxu0
    %v193 = vpop.f32.mrb[0].mxu0
    %194 = vdwg.mxu0
    %v195 = vld [vmem:[#allocation2] sm:$0xff]
    %v196 = vld [vmem:[#allocation2 + $0x8] sm:$0xff]
    %v197 = vld [vmem:[#allocation2 + $0x10] sm:$0xff]
    %v198 = vld [vmem:[#allocation2 + $0x18] sm:$0xff]
    %v199 = vld [vmem:[#allocation2 + $0x20] sm:$0xff]
    %v200 = vld [vmem:[#allocation2 + $0x28] sm:$0xff]
    %v201 = vld [vmem:[#allocation2 + $0x30] sm:$0xff]
    %v202 = vld [vmem:[#allocation2 + $0x38] sm:$0xff]
    %v203 = vld [vmem:[#allocation2 + $0x40] sm:$0xff]
    %v204 = vld [vmem:[#allocation2 + $0x48] sm:$0xff]
    %v205 = vld [vmem:[#allocation2 + $0x50] sm:$0xff]
    %v206 = vld [vmem:[#allocation2 + $0x58] sm:$0xff]
    %v207 = vld [vmem:[#allocation2 + $0x60] sm:$0xff]
    %v208 = vld [vmem:[#allocation2 + $0x68] sm:$0xff]
    %v209 = vld [vmem:[#allocation2 + $0x70] sm:$0xff]
    %v210 = vld [vmem:[#allocation2 + $0x78] sm:$0xff]
    %v211 = vld [vmem:[#allocation2 + $0x80] sm:$0xff]
    %v212 = vld [vmem:[#allocation2 + $0x88] sm:$0xff]
    %v213 = vld [vmem:[#allocation2 + $0x90] sm:$0xff]
    %v214 = vld [vmem:[#allocation2 + $0x98] sm:$0xff]
    %v215 = vld [vmem:[#allocation2 + $0xa0] sm:$0xff]
    %v216 = vld [vmem:[#allocation2 + $0xa8] sm:$0xff]
    %v217 = vld [vmem:[#allocation2 + $0xb0] sm:$0xff]
    %v218 = vld [vmem:[#allocation2 + $0xb8] sm:$0xff]
    %v219 = vld [vmem:[#allocation2 + $0xc0] sm:$0xff]
    %v220 = vld [vmem:[#allocation2 + $0xc8] sm:$0xff]
    %v221 = vld [vmem:[#allocation2 + $0xd0] sm:$0xff]
    %v222 = vld [vmem:[#allocation2 + $0xd8] sm:$0xff]
    %v223 = vld [vmem:[#allocation2 + $0xe0] sm:$0xff]
    %v224 = vld [vmem:[#allocation2 + $0xe8] sm:$0xff]
    %v225 = vld [vmem:[#allocation2 + $0xf0] sm:$0xff]
    %v226 = vld [vmem:[#allocation2 + $0xf8] sm:$0xff]
    %v259 = vunpack.c.l.b16 %v195
    %v260 = vunpack.c.h.b16 %v195
    %v261 = vunpack.c.l.b16 %v196
    %v262 = vunpack.c.h.b16 %v196
    %v263 = vunpack.c.l.b16 %v197
    %v264 = vunpack.c.h.b16 %v197
    %v265 = vunpack.c.l.b16 %v198
    %v266 = vunpack.c.h.b16 %v198
    %v267 = vunpack.c.l.b16 %v199
    %v268 = vunpack.c.h.b16 %v199
    %v269 = vunpack.c.l.b16 %v200
    %v270 = vunpack.c.h.b16 %v200
    %v271 = vunpack.c.l.b16 %v201
    %v272 = vunpack.c.h.b16 %v201
    %v273 = vunpack.c.l.b16 %v202
    %v274 = vunpack.c.h.b16 %v202
    %v275 = vunpack.c.l.b16 %v203
    %v276 = vunpack.c.h.b16 %v203
    %v277 = vunpack.c.l.b16 %v204
    %v278 = vunpack.c.h.b16 %v204
    %v279 = vunpack.c.l.b16 %v205
    %v280 = vunpack.c.h.b16 %v205
    %v281 = vunpack.c.l.b16 %v206
    %v282 = vunpack.c.h.b16 %v206
    %v283 = vunpack.c.l.b16 %v207
    %v284 = vunpack.c.h.b16 %v207
    %v285 = vunpack.c.l.b16 %v208
    %v286 = vunpack.c.h.b16 %v208
    %v287 = vunpack.c.l.b16 %v209
    %v288 = vunpack.c.h.b16 %v209
    %v289 = vunpack.c.l.b16 %v210
    %v290 = vunpack.c.h.b16 %v210
    %v291 = vunpack.c.l.b16 %v211
    %v292 = vunpack.c.h.b16 %v211
    %v293 = vunpack.c.l.b16 %v212
    %v294 = vunpack.c.h.b16 %v212
    %v295 = vunpack.c.l.b16 %v213
    %v296 = vunpack.c.h.b16 %v213
    %v297 = vunpack.c.l.b16 %v214
    %v298 = vunpack.c.h.b16 %v214
    %v299 = vunpack.c.l.b16 %v215
    %v300 = vunpack.c.h.b16 %v215
    %v301 = vunpack.c.l.b16 %v216
    %v302 = vunpack.c.h.b16 %v216
    %v303 = vunpack.c.l.b16 %v217
    %v304 = vunpack.c.h.b16 %v217
    %v305 = vunpack.c.l.b16 %v218
    %v306 = vunpack.c.h.b16 %v218
    %v307 = vunpack.c.l.b16 %v219
    %v308 = vunpack.c.h.b16 %v219
    %v309 = vunpack.c.l.b16 %v220
    %v310 = vunpack.c.h.b16 %v220
    %v311 = vunpack.c.l.b16 %v221
    %v312 = vunpack.c.h.b16 %v221
    %v313 = vunpack.c.l.b16 %v222
    %v314 = vunpack.c.h.b16 %v222
    %v315 = vunpack.c.l.b16 %v223
    %v316 = vunpack.c.h.b16 %v223
    %v317 = vunpack.c.l.b16 %v224
    %v318 = vunpack.c.h.b16 %v224
    %v319 = vunpack.c.l.b16 %v225
    %v320 = vunpack.c.h.b16 %v225
    %v321 = vunpack.c.l.b16 %v226
    %v322 = vunpack.c.h.b16 %v226
    %v323 = vpack.c.b16 %v263, %v259
    %v324 = vpack.c.b16 %v264, %v260
    %v325 = vpack.c.b16 %v265, %v261
    %v326 = vpack.c.b16 %v266, %v262
    %v327 = vpack.c.b16 %v271, %v267
    %v328 = vpack.c.b16 %v272, %v268
    %v329 = vpack.c.b16 %v273, %v269
    %v330 = vpack.c.b16 %v274, %v270
    %v331 = vpack.c.b16 %v279, %v275
    %v332 = vpack.c.b16 %v280, %v276
    %v333 = vpack.c.b16 %v281, %v277
    %v334 = vpack.c.b16 %v282, %v278
    %v335 = vpack.c.b16 %v287, %v283
    %v336 = vpack.c.b16 %v288, %v284
    %v337 = vpack.c.b16 %v289, %v285
    %v338 = vpack.c.b16 %v290, %v286
    %v339 = vpack.c.b16 %v295, %v291
    %v340 = vpack.c.b16 %v296, %v292
    %v341 = vpack.c.b16 %v297, %v293
    %v342 = vpack.c.b16 %v298, %v294
    %v343 = vpack.c.b16 %v303, %v299
    %v344 = vpack.c.b16 %v304, %v300
    %v345 = vpack.c.b16 %v305, %v301
    %v346 = vpack.c.b16 %v306, %v302
    %v347 = vpack.c.b16 %v311, %v307
    %v348 = vpack.c.b16 %v312, %v308
    %v349 = vpack.c.b16 %v313, %v309
    %v350 = vpack.c.b16 %v314, %v310
    %v351 = vpack.c.b16 %v319, %v315
    %v352 = vpack.c.b16 %v320, %v316
    %v353 = vpack.c.b16 %v321, %v317
    %v354 = vpack.c.b16 %v322, %v318
    %387 = vmatprep.subr.bf16.mxu0 %v324
    %388 = vmatpush1.bf16.msra.mxu0 %v323
    %389 = vmatprep.subr.bf16.mxu0 %v328
    %390 = vmatpush1.bf16.msra.mxu0 %v327
    %391 = vmatprep.subr.bf16.mxu0 %v332
    %392 = vmatpush1.bf16.msra.mxu0 %v331
    %393 = vmatprep.subr.bf16.mxu0 %v336
    %394 = vmatpush1.bf16.msra.mxu0 %v335
    %395 = vmatprep.subr.bf16.mxu0 %v340
    %396 = vmatpush1.bf16.msra.mxu0 %v339
    %397 = vmatprep.subr.bf16.mxu0 %v344
    %398 = vmatpush1.bf16.msra.mxu0 %v343
    %399 = vmatprep.subr.bf16.mxu0 %v348
    %400 = vmatpush1.bf16.msra.mxu0 %v347
    %401 = vmatprep.subr.bf16.mxu0 %v352
    %402 = vmatpush1.bf16.msra.mxu0 %v351
    %403 = vmatprep.subr.bf16.mxu0 0
    %404 = vmatpush1.bf16.msra.mxu0 0
    %405 = vmatprep.subr.bf16.mxu0 0
    %406 = vmatpush1.bf16.msra.mxu0 0
    %407 = vmatprep.subr.bf16.mxu0 0
    %408 = vmatpush1.bf16.msra.mxu0 0
    %409 = vmatprep.subr.bf16.mxu0 0
    %410 = vmatpush1.bf16.msra.mxu0 0
    %411 = vmatprep.subr.bf16.mxu0 0
    %412 = vmatpush1.bf16.msra.mxu0 0
    %413 = vmatprep.subr.bf16.mxu0 0
    %414 = vmatpush1.bf16.msra.mxu0 0
    %415 = vmatprep.subr.bf16.mxu0 0
    %416 = vmatpush1.bf16.msra.mxu0 0
    %417 = vmatprep.subr.bf16.mxu0 0
    %418 = vmatpush1.bf16.msra.mxu0 0
    %419 = vmatprep.mubr.bf16.mxu0 0
    %420 = vmatmul.mubr.bf16.gmra.mrb[0].mxu0 0
    %v421 = vpop.f32.mrb[0].mxu0
    %v422 = vadd.f32 0.0, %v421
    %v423 = vpop.f32.mrb[0].mxu0
    %v424 = vadd.f32 0.0, %v423
    %v425 = vpop.f32.mrb[0].mxu0
    %v426 = vpop.f32.mrb[0].mxu0
    %427 = vdwg.mxu0
    %428 = vmatprep.subr.bf16.mxu0 %v326
    %429 = vmatpush1.bf16.msra.mxu0 %v325
    %430 = vmatprep.subr.bf16.mxu0 %v330
    %431 = vmatpush1.bf16.msra.mxu0 %v329
    %432 = vmatprep.subr.bf16.mxu0 %v334
    %433 = vmatpush1.bf16.msra.mxu0 %v333
    %434 = vmatprep.subr.bf16.mxu0 %v338
    %435 = vmatpush1.bf16.msra.mxu0 %v337
    %436 = vmatprep.subr.bf16.mxu0 %v342
    %437 = vmatpush1.bf16.msra.mxu0 %v341
    %438 = vmatprep.subr.bf16.mxu0 %v346
    %439 = vmatpush1.bf16.msra.mxu0 %v345
    %440 = vmatprep.subr.bf16.mxu0 %v350
    %441 = vmatpush1.bf16.msra.mxu0 %v349
    %442 = vmatprep.subr.bf16.mxu0 %v354
    %443 = vmatpush1.bf16.msra.mxu0 %v353
    %444 = vmatprep.subr.bf16.mxu0 0
    %445 = vmatpush1.bf16.msra.mxu0 0
    %446 = vmatprep.subr.bf16.mxu0 0
    %447 = vmatpush1.bf16.msra.mxu0 0
    %448 = vmatprep.subr.bf16.mxu0 0
    %449 = vmatpush1.bf16.msra.mxu0 0
    %450 = vmatprep.subr.bf16.mxu0 0
    %451 = vmatpush1.bf16.msra.mxu0 0
    %452 = vmatprep.subr.bf16.mxu0 0
    %453 = vmatpush1.bf16.msra.mxu0 0
    %454 = vmatprep.subr.bf16.mxu0 0
    %455 = vmatpush1.bf16.msra.mxu0 0
    %456 = vmatprep.subr.bf16.mxu0 0
    %457 = vmatpush1.bf16.msra.mxu0 0
    %458 = vmatprep.subr.bf16.mxu0 0
    %459 = vmatpush1.bf16.msra.mxu0 0
    %460 = vmatprep.mubr.bf16.mxu0 0
    %461 = vmatmul.mubr.bf16.gmra.mrb[0].mxu0 0
    %v462 = vpop.f32.mrb[0].mxu0
    %v463 = vadd.f32 0.0, %v462
    %v464 = vpop.f32.mrb[0].mxu0
    %v465 = vadd.f32 0.0, %v464
    %v466 = vpop.f32.mrb[0].mxu0
    %v467 = vpop.f32.mrb[0].mxu0
    %468 = vdwg.mxu0
    %v469 = vadd.f32 %v148, %v422
    %v470 = vadd.f32 %v150, %v424
    %v471 = vadd.f32 %v189, %v463
    %v472 = vadd.f32 %v191, %v465
    %v473 = vmul.f32 %v469, 0.5
    %v474 = vtanh.pop %v473
    %v475 = vmul.f32 %v474, 0.5
    %v476 = vadd.f32 %v475, 0.5
    %v477 = vmul.f32 %v470, 0.5
    %v478 = vtanh.pop %v477
    %v479 = vmul.f32 %v478, 0.5
    %v480 = vadd.f32 %v479, 0.5
    %v481 = vtanh.pop %v471
    %v482 = vmul.f32 %v472, 0.5
    %v483 = vtanh.pop %v482
    %v484 = vmul.f32 %v483, 0.5
    %v485 = vadd.f32 %v484, 0.5
    %v486 = vmul.f32 %v480, 0.0
    %v487 = vmul.f32 %v476, %v481
    %v488 = vadd.f32 %v486, %v487
    %v489 = vtanh.pop %v488
    %v490 = vmul.f32 %v485, %v489
    %v491 = vpack.c.bf16 %v490, %v490
    %492 = vmatprep.subr.bf16.mxu0 %v324
    %493 = vmatpush1.bf16.msra.mxu0 %v323
    %494 = vmatprep.subr.bf16.mxu0 %v328
    %495 = vmatpush1.bf16.msra.mxu0 %v327
    %496 = vmatprep.subr.bf16.mxu0 %v332
    %497 = vmatpush1.bf16.msra.mxu0 %v331
    %498 = vmatprep.subr.bf16.mxu0 %v336
    %499 = vmatpush1.bf16.msra.mxu0 %v335
    %500 = vmatprep.subr.bf16.mxu0 %v340
    %501 = vmatpush1.bf16.msra.mxu0 %v339
    %502 = vmatprep.subr.bf16.mxu0 %v344
    %503 = vmatpush1.bf16.msra.mxu0 %v343
    %504 = vmatprep.subr.bf16.mxu0 %v348
    %505 = vmatpush1.bf16.msra.mxu0 %v347
    %506 = vmatprep.subr.bf16.mxu0 %v352
    %507 = vmatpush1.bf16.msra.mxu0 %v351
    %508 = vmatprep.subr.bf16.mxu0 0
    %509 = vmatpush1.bf16.msra.mxu0 0
    %510 = vmatprep.subr.bf16.mxu0 0
    %511 = vmatpush1.bf16.msra.mxu0 0
    %512 = vmatprep.subr.bf16.mxu0 0
    %513 = vmatpush1.bf16.msra.mxu0 0
    %514 = vmatprep.subr.bf16.mxu0 0
    %515 = vmatpush1.bf16.msra.mxu0 0
    %516 = vmatprep.subr.bf16.mxu0 0
    %517 = vmatpush1.bf16.msra.mxu0 0
    %518 = vmatprep.subr.bf16.mxu0 0
    %519 = vmatpush1.bf16.msra.mxu0 0
    %520 = vmatprep.subr.bf16.mxu0 0
    %521 = vmatpush1.bf16.msra.mxu0 0
    %522 = vmatprep.subr.bf16.mxu0 0
    %523 = vmatpush1.bf16.msra.mxu0 0
    %524 = vmatprep.mubr.bf16.mxu0 0
    %525 = vmatmul.mubr.bf16.gmra.mrb[0].mxu0 %v491
    %v526 = vpop.f32.mrb[0].mxu0
    %v527 = vadd.f32 0.0, %v526
    %v528 = vpop.f32.mrb[0].mxu0
    %v529 = vadd.f32 0.0, %v528
    %v530 = vpop.f32.mrb[0].mxu0
    %v531 = vpop.f32.mrb[0].mxu0
    %532 = vdwg.mxu0
    %533 = vmatprep.subr.bf16.mxu0 %v326
    %534 = vmatpush1.bf16.msra.mxu0 %v325
    %535 = vmatprep.subr.bf16.mxu0 %v330
    %536 = vmatpush1.bf16.msra.mxu0 %v329
    %537 = vmatprep.subr.bf16.mxu0 %v334
    %538 = vmatpush1.bf16.msra.mxu0 %v333
    %539 = vmatprep.subr.bf16.mxu0 %v338
    %540 = vmatpush1.bf16.msra.mxu0 %v337
    %541 = vmatprep.subr.bf16.mxu0 %v342
    %542 = vmatpush1.bf16.msra.mxu0 %v341
    %543 = vmatprep.subr.bf16.mxu0 %v346
    %544 = vmatpush1.bf16.msra.mxu0 %v345
    %545 = vmatprep.subr.bf16.mxu0 %v350
    %546 = vmatpush1.bf16.msra.mxu0 %v349
    %547 = vmatprep.subr.bf16.mxu0 %v354
    %548 = vmatpush1.bf16.msra.mxu0 %v353
    %549 = vmatprep.subr.bf16.mxu0 0
    %550 = vmatpush1.bf16.msra.mxu0 0
    %551 = vmatprep.subr.bf16.mxu0 0
    %552 = vmatpush1.bf16.msra.mxu0 0
    %553 = vmatprep.subr.bf16.mxu0 0
    %554 = vmatpush1.bf16.msra.mxu0 0
    %555 = vmatprep.subr.bf16.mxu0 0
    %556 = vmatpush1.bf16.msra.mxu0 0
    %557 = vmatprep.subr.bf16.mxu0 0
    %558 = vmatpush1.bf16.msra.mxu0 0
    %559 = vmatprep.subr.bf16.mxu0 0
    %560 = vmatpush1.bf16.msra.mxu0 0
    %561 = vmatprep.subr.bf16.mxu0 0
    %562 = vmatpush1.bf16.msra.mxu0 0
    %563 = vmatprep.subr.bf16.mxu0 0
    %564 = vmatpush1.bf16.msra.mxu0 0
    %565 = vmatprep.mubr.bf16.mxu0 0
    %566 = vmatmul.mubr.bf16.gmra.mrb[0].mxu0 %v491
    %v567 = vpop.f32.mrb[0].mxu0
    %v568 = vadd.f32 0.0, %v567
    %v569 = vpop.f32.mrb[0].mxu0
    %v570 = vadd.f32 0.0, %v569
    %v571 = vpop.f32.mrb[0].mxu0
    %v572 = vpop.f32.mrb[0].mxu0
    %573 = vdwg.mxu0
    %v578 = vrot.slane %v527, 7
    %v579 = vrot.slane %v529, 7
    %v580 = vrot.slane %v568, 7
    %v581 = vrot.slane %v570, 7
    %v586 = vadd.f32 %v148, %v578
    %v587 = vadd.f32 %v150, %v579
    %v588 = vadd.f32 %v189, %v580
    %v589 = vadd.f32 %v191, %v581
    %v590 = vmul.f32 %v586, 0.5
    %v591 = vtanh.pop %v590
    %v592 = vmul.f32 %v591, 0.5
    %v593 = vadd.f32 %v592, 0.5
    %v594 = vmul.f32 %v587, 0.5
    %v595 = vtanh.pop %v594
    %v596 = vmul.f32 %v595, 0.5
    %v597 = vadd.f32 %v596, 0.5
    %v598 = vtanh.pop %v588
    %v599 = vmul.f32 %v589, 0.5
    %v600 = vtanh.pop %v599
    %v601 = vmul.f32 %v600, 0.5
    %v602 = vadd.f32 %v601, 0.5
    %v604 = vrot.slane %v488, 7
    %v606 = vmul.f32 %v597, %v604
    %v607 = vmul.f32 %v593, %v598
    %v608 = vadd.f32 %v606, %v607
    %v609 = vtanh.pop %v608
    %v610 = vmul.f32 %v602, %v609
    %v611 = vpack.c.bf16 %v610, %v610
    %v613 = vshrl.u32 %v611, 16
    %616 = vmatprep.subr.bf16.mxu0 %v324
    %617 = vmatpush1.bf16.msra.mxu0 %v323
    %618 = vmatprep.subr.bf16.mxu0 %v328
    %619 = vmatpush1.bf16.msra.mxu0 %v327
    %620 = vmatprep.subr.bf16.mxu0 %v332
    %621 = vmatpush1.bf16.msra.mxu0 %v331
    %622 = vmatprep.subr.bf16.mxu0 %v336
    %623 = vmatpush1.bf16.msra.mxu0 %v335
    %624 = vmatprep.subr.bf16.mxu0 %v340
    %625 = vmatpush1.bf16.msra.mxu0 %v339
    %626 = vmatprep.subr.bf16.mxu0 %v344
    %627 = vmatpush1.bf16.msra.mxu0 %v343
    %628 = vmatprep.subr.bf16.mxu0 %v348
    %629 = vmatpush1.bf16.msra.mxu0 %v347
    %630 = vmatprep.subr.bf16.mxu0 %v352
    %631 = vmatpush1.bf16.msra.mxu0 %v351
    %632 = vmatprep.subr.bf16.mxu0 0
    %633 = vmatpush1.bf16.msra.mxu0 0
    %634 = vmatprep.subr.bf16.mxu0 0
    %635 = vmatpush1.bf16.msra.mxu0 0
    %636 = vmatprep.subr.bf16.mxu0 0
    %637 = vmatpush1.bf16.msra.mxu0 0
    %638 = vmatprep.subr.bf16.mxu0 0
    %639 = vmatpush1.bf16.msra.mxu0 0
    %640 = vmatprep.subr.bf16.mxu0 0
    %641 = vmatpush1.bf16.msra.mxu0 0
    %642 = vmatprep.subr.bf16.mxu0 0
    %643 = vmatpush1.bf16.msra.mxu0 0
    %644 = vmatprep.subr.bf16.mxu0 0
    %645 = vmatpush1.bf16.msra.mxu0 0
    %646 = vmatprep.subr.bf16.mxu0 0
    %647 = vmatpush1.bf16.msra.mxu0 0
    %648 = vmatprep.mubr.bf16.mxu0 0
    %649 = vmatmul.mubr.bf16.gmra.mrb[0].mxu0 %v613
    %v650 = vpop.f32.mrb[0].mxu0
    %v651 = vadd.f32 0.0, %v650
    %v652 = vpop.f32.mrb[0].mxu0
    %v653 = vadd.f32 0.0, %v652
    %v654 = vpop.f32.mrb[0].mxu0
    %v655 = vpop.f32.mrb[0].mxu0
    %656 = vdwg.mxu0
    %657 = vmatprep.subr.bf16.mxu0 %v326
    %658 = vmatpush1.bf16.msra.mxu0 %v325
    %659 = vmatprep.subr.bf16.mxu0 %v330
    %660 = vmatpush1.bf16.msra.mxu0 %v329
    %661 = vmatprep.subr.bf16.mxu0 %v334
    %662 = vmatpush1.bf16.msra.mxu0 %v333
    %663 = vmatprep.subr.bf16.mxu0 %v338
    %664 = vmatpush1.bf16.msra.mxu0 %v337
    %665 = vmatprep.subr.bf16.mxu0 %v342
    %666 = vmatpush1.bf16.msra.mxu0 %v341
    %667 = vmatprep.subr.bf16.mxu0 %v346
    %668 = vmatpush1.bf16.msra.mxu0 %v345
    %669 = vmatprep.subr.bf16.mxu0 %v350
    %670 = vmatpush1.bf16.msra.mxu0 %v349
    %671 = vmatprep.subr.bf16.mxu0 %v354
    %672 = vmatpush1.bf16.msra.mxu0 %v353
    %673 = vmatprep.subr.bf16.mxu0 0
    %674 = vmatpush1.bf16.msra.mxu0 0
    %675 = vmatprep.subr.bf16.mxu0 0
    %676 = vmatpush1.bf16.msra.mxu0 0
    %677 = vmatprep.subr.bf16.mxu0 0
    %678 = vmatpush1.bf16.msra.mxu0 0
    %679 = vmatprep.subr.bf16.mxu0 0
    %680 = vmatpush1.bf16.msra.mxu0 0
    %681 = vmatprep.subr.bf16.mxu0 0
    %682 = vmatpush1.bf16.msra.mxu0 0
    %683 = vmatprep.subr.bf16.mxu0 0
    %684 = vmatpush1.bf16.msra.mxu0 0
    %685 = vmatprep.subr.bf16.mxu0 0
    %686 = vmatpush1.bf16.msra.mxu0 0
    %687 = vmatprep.subr.bf16.mxu0 0
    %688 = vmatpush1.bf16.msra.mxu0 0
    %689 = vmatprep.mubr.bf16.mxu0 0
    %690 = vmatmul.mubr.bf16.gmra.mrb[0].mxu0 %v613
    %v691 = vpop.f32.mrb[0].mxu0
    %v692 = vadd.f32 0.0, %v691
    %v693 = vpop.f32.mrb[0].mxu0
    %v694 = vadd.f32 0.0, %v693
    %v695 = vpop.f32.mrb[0].mxu0
    %v696 = vpop.f32.mrb[0].mxu0
    %697 = vdwg.mxu0
    %v702 = vrot.slane %v651, 6
    %v703 = vrot.slane %v653, 6
    %v704 = vrot.slane %v692, 6
    %v705 = vrot.slane %v694, 6
    %v710 = vadd.f32 %v148, %v702
    %v711 = vadd.f32 %v150, %v703
    %v712 = vadd.f32 %v189, %v704
    %v713 = vadd.f32 %v191, %v705
    %v714 = vmul.f32 %v710, 0.5
    %v715 = vtanh.pop %v714
    %v716 = vmul.f32 %v715, 0.5
    %v717 = vadd.f32 %v716, 0.5
    %v718 = vmul.f32 %v711, 0.5
    %v719 = vtanh.pop %v718
    %v720 = vmul.f32 %v719, 0.5
    %v721 = vadd.f32 %v720, 0.5
    %v722 = vtanh.pop %v712
    %v723 = vmul.f32 %v713, 0.5
    %v724 = vtanh.pop %v723
    %v725 = vmul.f32 %v724, 0.5
    %v726 = vadd.f32 %v725, 0.5
    %v728 = vrot.slane %v608, 7
    %v730 = vmul.f32 %v721, %v728
    %v731 = vmul.f32 %v717, %v722
    %v732 = vadd.f32 %v730, %v731
    %v733 = vtanh.pop %v732
    %v734 = vmul.f32 %v726, %v733
    %v735 = vpack.c.bf16 %v734, %v734
    %v737 = vrot.slane %v735, 1
    %739 = vmatprep.subr.bf16.mxu0 %v324
    %740 = vmatpush1.bf16.msra.mxu0 %v323
    %741 = vmatprep.subr.bf16.mxu0 %v328
    %742 = vmatpush1.bf16.msra.mxu0 %v327
    %743 = vmatprep.subr.bf16.mxu0 %v332
    %744 = vmatpush1.bf16.msra.mxu0 %v331
    %745 = vmatprep.subr.bf16.mxu0 %v336
    %746 = vmatpush1.bf16.msra.mxu0 %v335
    %747 = vmatprep.subr.bf16.mxu0 %v340
    %748 = vmatpush1.bf16.msra.mxu0 %v339
    %749 = vmatprep.subr.bf16.mxu0 %v344
    %750 = vmatpush1.bf16.msra.mxu0 %v343
    %751 = vmatprep.subr.bf16.mxu0 %v348
    %752 = vmatpush1.bf16.msra.mxu0 %v347
    %753 = vmatprep.subr.bf16.mxu0 %v352
    %754 = vmatpush1.bf16.msra.mxu0 %v351
    %755 = vmatprep.subr.bf16.mxu0 0
    %756 = vmatpush1.bf16.msra.mxu0 0
    %757 = vmatprep.subr.bf16.mxu0 0
    %758 = vmatpush1.bf16.msra.mxu0 0
    %759 = vmatprep.subr.bf16.mxu0 0
    %760 = vmatpush1.bf16.msra.mxu0 0
    %761 = vmatprep.subr.bf16.mxu0 0
    %762 = vmatpush1.bf16.msra.mxu0 0
    %763 = vmatprep.subr.bf16.mxu0 0
    %764 = vmatpush1.bf16.msra.mxu0 0
    %765 = vmatprep.subr.bf16.mxu0 0
    %766 = vmatpush1.bf16.msra.mxu0 0
    %767 = vmatprep.subr.bf16.mxu0 0
    %768 = vmatpush1.bf16.msra.mxu0 0
    %769 = vmatprep.subr.bf16.mxu0 0
    %770 = vmatpush1.bf16.msra.mxu0 0
    %771 = vmatprep.mubr.bf16.mxu0 0
    %772 = vmatmul.mubr.bf16.gmra.mrb[0].mxu0 %v737
    %v773 = vpop.f32.mrb[0].mxu0
    %v774 = vadd.f32 0.0, %v773
    %v775 = vpop.f32.mrb[0].mxu0
    %v776 = vadd.f32 0.0, %v775
    %v777 = vpop.f32.mrb[0].mxu0
    %v778 = vpop.f32.mrb[0].mxu0
    %779 = vdwg.mxu0
    %780 = vmatprep.subr.bf16.mxu0 %v326
    %781 = vmatpush1.bf16.msra.mxu0 %v325
    %782 = vmatprep.subr.bf16.mxu0 %v330
    %783 = vmatpush1.bf16.msra.mxu0 %v329
    %784 = vmatprep.subr.bf16.mxu0 %v334
    %785 = vmatpush1.bf16.msra.mxu0 %v333
    %786 = vmatprep.subr.bf16.mxu0 %v338
    %787 = vmatpush1.bf16.msra.mxu0 %v337
    %788 = vmatprep.subr.bf16.mxu0 %v342
    %789 = vmatpush1.bf16.msra.mxu0 %v341
    %790 = vmatprep.subr.bf16.mxu0 %v346
    %791 = vmatpush1.bf16.msra.mxu0 %v345
    %792 = vmatprep.subr.bf16.mxu0 %v350
    %793 = vmatpush1.bf16.msra.mxu0 %v349
    %794 = vmatprep.subr.bf16.mxu0 %v354
    %795 = vmatpush1.bf16.msra.mxu0 %v353
    %796 = vmatprep.subr.bf16.mxu0 0
    %797 = vmatpush1.bf16.msra.mxu0 0
    %798 = vmatprep.subr.bf16.mxu0 0
    %799 = vmatpush1.bf16.msra.mxu0 0
    %800 = vmatprep.subr.bf16.mxu0 0
    %801 = vmatpush1.bf16.msra.mxu0 0
    %802 = vmatprep.subr.bf16.mxu0 0
    %803 = vmatpush1.bf16.msra.mxu0 0
    %804 = vmatprep.subr.bf16.mxu0 0
    %805 = vmatpush1.bf16.msra.mxu0 0
    %806 = vmatprep.subr.bf16.mxu0 0
    %807 = vmatpush1.bf16.msra.mxu0 0
    %808 = vmatprep.subr.bf16.mxu0 0
    %809 = vmatpush1.bf16.msra.mxu0 0
    %810 = vmatprep.subr.bf16.mxu0 0
    %811 = vmatpush1.bf16.msra.mxu0 0
    %812 = vmatprep.mubr.bf16.mxu0 0
    %813 = vmatmul.mubr.bf16.gmra.mrb[0].mxu0 %v737
    %v814 = vpop.f32.mrb[0].mxu0
    %v815 = vadd.f32 0.0, %v814
    %v816 = vpop.f32.mrb[0].mxu0
    %v817 = vadd.f32 0.0, %v816
    %v818 = vpop.f32.mrb[0].mxu0
    %v819 = vpop.f32.mrb[0].mxu0
    %820 = vdwg.mxu0
    %v825 = vrot.slane %v774, 5
    %v826 = vrot.slane %v776, 5
    %v827 = vrot.slane %v815, 5
    %v828 = vrot.slane %v817, 5
    %v833 = vadd.f32 %v148, %v825
    %v834 = vadd.f32 %v150, %v826
    %v835 = vadd.f32 %v189, %v827
    %v836 = vadd.f32 %v191, %v828
    %v837 = vmul.f32 %v833, 0.5
    %v838 = vtanh.pop %v837
    %v839 = vmul.f32 %v838, 0.5
    %v840 = vadd.f32 %v839, 0.5
    %v841 = vmul.f32 %v834, 0.5
    %v842 = vtanh.pop %v841
    %v843 = vmul.f32 %v842, 0.5
    %v844 = vadd.f32 %v843, 0.5
    %v845 = vtanh.pop %v835
    %v846 = vmul.f32 %v836, 0.5
    %v847 = vtanh.pop %v846
    %v848 = vmul.f32 %v847, 0.5
    %v849 = vadd.f32 %v848, 0.5
    %v851 = vrot.slane %v732, 7
    %v853 = vmul.f32 %v844, %v851
    %v854 = vmul.f32 %v840, %v845
    %v855 = vadd.f32 %v853, %v854
    %v856 = vtanh.pop %v855
    %v857 = vmul.f32 %v849, %v856
    %v858 = vpack.c.bf16 %v857, %v857
    %v860 = vshrl.u32 %v858, 16
    %v862 = vrot.slane %v860, 1
    %864 = vmatprep.subr.bf16.mxu0 %v324
    %865 = vmatpush1.bf16.msra.mxu0 %v323
    %866 = vmatprep.subr.bf16.mxu0 %v328
    %867 = vmatpush1.bf16.msra.mxu0 %v327
    %868 = vmatprep.subr.bf16.mxu0 %v332
    %869 = vmatpush1.bf16.msra.mxu0 %v331
    %870 = vmatprep.subr.bf16.mxu0 %v336
    %871 = vmatpush1.bf16.msra.mxu0 %v335
    %872 = vmatprep.subr.bf16.mxu0 %v340
    %873 = vmatpush1.bf16.msra.mxu0 %v339
    %874 = vmatprep.subr.bf16.mxu0 %v344
    %875 = vmatpush1.bf16.msra.mxu0 %v343
    %876 = vmatprep.subr.bf16.mxu0 %v348
    %877 = vmatpush1.bf16.msra.mxu0 %v347
    %878 = vmatprep.subr.bf16.mxu0 %v352
    %879 = vmatpush1.bf16.msra.mxu0 %v351
    %880 = vmatprep.subr.bf16.mxu0 0
    %881 = vmatpush1.bf16.msra.mxu0 0
    %882 = vmatprep.subr.bf16.mxu0 0
    %883 = vmatpush1.bf16.msra.mxu0 0
    %884 = vmatprep.subr.bf16.mxu0 0
    %885 = vmatpush1.bf16.msra.mxu0 0
    %886 = vmatprep.subr.bf16.mxu0 0
    %887 = vmatpush1.bf16.msra.mxu0 0
    %888 = vmatprep.subr.bf16.mxu0 0
    %889 = vmatpush1.bf16.msra.mxu0 0
    %890 = vmatprep.subr.bf16.mxu0 0
    %891 = vmatpush1.bf16.msra.mxu0 0
    %892 = vmatprep.subr.bf16.mxu0 0
    %893 = vmatpush1.bf16.msra.mxu0 0
    %894 = vmatprep.subr.bf16.mxu0 0
    %895 = vmatpush1.bf16.msra.mxu0 0
    %896 = vmatprep.mubr.bf16.mxu0 0
    %897 = vmatmul.mubr.bf16.gmra.mrb[0].mxu0 %v862
    %v898 = vpop.f32.mrb[0].mxu0
    %v899 = vadd.f32 0.0, %v898
    %v900 = vpop.f32.mrb[0].mxu0
    %v901 = vadd.f32 0.0, %v900
    %v902 = vpop.f32.mrb[0].mxu0
    %v903 = vpop.f32.mrb[0].mxu0
    %904 = vdwg.mxu0
    %905 = vmatprep.subr.bf16.mxu0 %v326
    %906 = vmatpush1.bf16.msra.mxu0 %v325
    %907 = vmatprep.subr.bf16.mxu0 %v330
    %908 = vmatpush1.bf16.msra.mxu0 %v329
    %909 = vmatprep.subr.bf16.mxu0 %v334
    %910 = vmatpush1.bf16.msra.mxu0 %v333
    %911 = vmatprep.subr.bf16.mxu0 %v338
    %912 = vmatpush1.bf16.msra.mxu0 %v337
    %913 = vmatprep.subr.bf16.mxu0 %v342
    %914 = vmatpush1.bf16.msra.mxu0 %v341
    %915 = vmatprep.subr.bf16.mxu0 %v346
    %916 = vmatpush1.bf16.msra.mxu0 %v345
    %917 = vmatprep.subr.bf16.mxu0 %v350
    %918 = vmatpush1.bf16.msra.mxu0 %v349
    %919 = vmatprep.subr.bf16.mxu0 %v354
    %920 = vmatpush1.bf16.msra.mxu0 %v353
    %921 = vmatprep.subr.bf16.mxu0 0
    %922 = vmatpush1.bf16.msra.mxu0 0
    %923 = vmatprep.subr.bf16.mxu0 0
    %924 = vmatpush1.bf16.msra.mxu0 0
    %925 = vmatprep.subr.bf16.mxu0 0
    %926 = vmatpush1.bf16.msra.mxu0 0
    %927 = vmatprep.subr.bf16.mxu0 0
    %928 = vmatpush1.bf16.msra.mxu0 0
    %929 = vmatprep.subr.bf16.mxu0 0
    %930 = vmatpush1.bf16.msra.mxu0 0
    %931 = vmatprep.subr.bf16.mxu0 0
    %932 = vmatpush1.bf16.msra.mxu0 0
    %933 = vmatprep.subr.bf16.mxu0 0
    %934 = vmatpush1.bf16.msra.mxu0 0
    %935 = vmatprep.subr.bf16.mxu0 0
    %936 = vmatpush1.bf16.msra.mxu0 0
    %937 = vmatprep.mubr.bf16.mxu0 0
    %938 = vmatmul.mubr.bf16.gmra.mrb[0].mxu0 %v862
    %v939 = vpop.f32.mrb[0].mxu0
    %v940 = vadd.f32 0.0, %v939
    %v941 = vpop.f32.mrb[0].mxu0
    %v942 = vadd.f32 0.0, %v941
    %v943 = vpop.f32.mrb[0].mxu0
    %v944 = vpop.f32.mrb[0].mxu0
    %945 = vdwg.mxu0
    %v950 = vrot.slane %v899, 4
    %v951 = vrot.slane %v901, 4
    %v952 = vrot.slane %v940, 4
    %v953 = vrot.slane %v942, 4
    %v958 = vadd.f32 %v148, %v950
    %v959 = vadd.f32 %v150, %v951
    %v960 = vadd.f32 %v189, %v952
    %v961 = vadd.f32 %v191, %v953
    %v962 = vmul.f32 %v958, 0.5
    %v963 = vtanh.pop %v962
    %v964 = vmul.f32 %v963, 0.5
    %v965 = vadd.f32 %v964, 0.5
    %v966 = vmul.f32 %v959, 0.5
    %v967 = vtanh.pop %v966
    %v968 = vmul.f32 %v967, 0.5
    %v969 = vadd.f32 %v968, 0.5
    %v970 = vtanh.pop %v960
    %v971 = vmul.f32 %v961, 0.5
    %v972 = vtanh.pop %v971
    %v973 = vmul.f32 %v972, 0.5
    %v974 = vadd.f32 %v973, 0.5
    %v976 = vrot.slane %v855, 7
    %v978 = vmul.f32 %v969, %v976
    %v979 = vmul.f32 %v965, %v970
    %v980 = vadd.f32 %v978, %v979
    %v981 = vtanh.pop %v980
    %v982 = vmul.f32 %v974, %v981
    %v983 = vpack.c.bf16 %v982, %v982
    %v985 = vrot.slane %v983, 2
    %987 = vmatprep.subr.bf16.mxu0 %v324
    %988 = vmatpush1.bf16.msra.mxu0 %v323
    %989 = vmatprep.subr.bf16.mxu0 %v328
    %990 = vmatpush1.bf16.msra.mxu0 %v327
    %991 = vmatprep.subr.bf16.mxu0 %v332
    %992 = vmatpush1.bf16.msra.mxu0 %v331
    %993 = vmatprep.subr.bf16.mxu0 %v336
    %994 = vmatpush1.bf16.msra.mxu0 %v335
    %995 = vmatprep.subr.bf16.mxu0 %v340
    %996 = vmatpush1.bf16.msra.mxu0 %v339
    %997 = vmatprep.subr.bf16.mxu0 %v344
    %998 = vmatpush1.bf16.msra.mxu0 %v343
    %999 = vmatprep.subr.bf16.mxu0 %v348
    %1000 = vmatpush1.bf16.msra.mxu0 %v347
    %1001 = vmatprep.subr.bf16.mxu0 %v352
    %1002 = vmatpush1.bf16.msra.mxu0 %v351
    %1003 = vmatprep.subr.bf16.mxu0 0
    %1004 = vmatpush1.bf16.msra.mxu0 0
    %1005 = vmatprep.subr.bf16.mxu0 0
    %1006 = vmatpush1.bf16.msra.mxu0 0
    %1007 = vmatprep.subr.bf16.mxu0 0
    %1008 = vmatpush1.bf16.msra.mxu0 0
    %1009 = vmatprep.subr.bf16.mxu0 0
    %1010 = vmatpush1.bf16.msra.mxu0 0
    %1011 = vmatprep.subr.bf16.mxu0 0
    %1012 = vmatpush1.bf16.msra.mxu0 0
    %1013 = vmatprep.subr.bf16.mxu0 0
    %1014 = vmatpush1.bf16.msra.mxu0 0
    %1015 = vmatprep.subr.bf16.mxu0 0
    %1016 = vmatpush1.bf16.msra.mxu0 0
    %1017 = vmatprep.subr.bf16.mxu0 0
    %1018 = vmatpush1.bf16.msra.mxu0 0
    %1019 = vmatprep.mubr.bf16.mxu0 0
    %1020 = vmatmul.mubr.bf16.gmra.mrb[0].mxu0 %v985
    %v1021 = vpop.f32.mrb[0].mxu0
    %v1022 = vadd.f32 0.0, %v1021
    %v1023 = vpop.f32.mrb[0].mxu0
    %v1024 = vadd.f32 0.0, %v1023
    %v1025 = vpop.f32.mrb[0].mxu0
    %v1026 = vpop.f32.mrb[0].mxu0
    %1027 = vdwg.mxu0
    %1028 = vmatprep.subr.bf16.mxu0 %v326
    %1029 = vmatpush1.bf16.msra.mxu0 %v325
    %1030 = vmatprep.subr.bf16.mxu0 %v330
    %1031 = vmatpush1.bf16.msra.mxu0 %v329
    %1032 = vmatprep.subr.bf16.mxu0 %v334
    %1033 = vmatpush1.bf16.msra.mxu0 %v333
    %1034 = vmatprep.subr.bf16.mxu0 %v338
    %1035 = vmatpush1.bf16.msra.mxu0 %v337
    %1036 = vmatprep.subr.bf16.mxu0 %v342
    %1037 = vmatpush1.bf16.msra.mxu0 %v341
    %1038 = vmatprep.subr.bf16.mxu0 %v346
    %1039 = vmatpush1.bf16.msra.mxu0 %v345
    %1040 = vmatprep.subr.bf16.mxu0 %v350
    %1041 = vmatpush1.bf16.msra.mxu0 %v349
    %1042 = vmatprep.subr.bf16.mxu0 %v354
    %1043 = vmatpush1.bf16.msra.mxu0 %v353
    %1044 = vmatprep.subr.bf16.mxu0 0
    %1045 = vmatpush1.bf16.msra.mxu0 0
    %1046 = vmatprep.subr.bf16.mxu0 0
    %1047 = vmatpush1.bf16.msra.mxu0 0
    %1048 = vmatprep.subr.bf16.mxu0 0
    %1049 = vmatpush1.bf16.msra.mxu0 0
    %1050 = vmatprep.subr.bf16.mxu0 0
    %1051 = vmatpush1.bf16.msra.mxu0 0
    %1052 = vmatprep.subr.bf16.mxu0 0
    %1053 = vmatpush1.bf16.msra.mxu0 0
    %1054 = vmatprep.subr.bf16.mxu0 0
    %1055 = vmatpush1.bf16.msra.mxu0 0
    %1056 = vmatprep.subr.bf16.mxu0 0
    %1057 = vmatpush1.bf16.msra.mxu0 0
    %1058 = vmatprep.subr.bf16.mxu0 0
    %1059 = vmatpush1.bf16.msra.mxu0 0
    %1060 = vmatprep.mubr.bf16.mxu0 0
    %1061 = vmatmul.mubr.bf16.gmra.mrb[0].mxu0 %v985
    %v1062 = vpop.f32.mrb[0].mxu0
    %v1063 = vadd.f32 0.0, %v1062
    %v1064 = vpop.f32.mrb[0].mxu0
    %v1065 = vadd.f32 0.0, %v1064
    %v1066 = vpop.f32.mrb[0].mxu0
    %v1067 = vpop.f32.mrb[0].mxu0
    %1068 = vdwg.mxu0
    %v1073 = vrot.slane %v1022, 3
    %v1074 = vrot.slane %v1024, 3
    %v1075 = vrot.slane %v1063, 3
    %v1076 = vrot.slane %v1065, 3
    %v1081 = vadd.f32 %v148, %v1073
    %v1082 = vadd.f32 %v150, %v1074
    %v1083 = vadd.f32 %v189, %v1075
    %v1084 = vadd.f32 %v191, %v1076
    %v1085 = vmul.f32 %v1081, 0.5
    %v1086 = vtanh.pop %v1085
    %v1087 = vmul.f32 %v1086, 0.5
    %v1088 = vadd.f32 %v1087, 0.5
    %v1089 = vmul.f32 %v1082, 0.5
    %v1090 = vtanh.pop %v1089
    %v1091 = vmul.f32 %v1090, 0.5
    %v1092 = vadd.f32 %v1091, 0.5
    %v1093 = vtanh.pop %v1083
    %v1094 = vmul.f32 %v1084, 0.5
    %v1095 = vtanh.pop %v1094
    %v1096 = vmul.f32 %v1095, 0.5
    %v1097 = vadd.f32 %v1096, 0.5
    %v1099 = vrot.slane %v980, 7
    %v1101 = vmul.f32 %v1092, %v1099
    %v1102 = vmul.f32 %v1088, %v1093
    %v1103 = vadd.f32 %v1101, %v1102
    %v1104 = vtanh.pop %v1103
    %v1105 = vmul.f32 %v1097, %v1104
    %v1106 = vpack.c.bf16 %v1105, %v1105
    %v1108 = vshrl.u32 %v1106, 16
    %v1110 = vrot.slane %v1108, 2
    %1112 = vmatprep.subr.bf16.mxu0 %v324
    %1113 = vmatpush1.bf16.msra.mxu0 %v323
    %1114 = vmatprep.subr.bf16.mxu0 %v328
    %1115 = vmatpush1.bf16.msra.mxu0 %v327
    %1116 = vmatprep.subr.bf16.mxu0 %v332
    %1117 = vmatpush1.bf16.msra.mxu0 %v331
    %1118 = vmatprep.subr.bf16.mxu0 %v336
    %1119 = vmatpush1.bf16.msra.mxu0 %v335
    %1120 = vmatprep.subr.bf16.mxu0 %v340
    %1121 = vmatpush1.bf16.msra.mxu0 %v339
    %1122 = vmatprep.subr.bf16.mxu0 %v344
    %1123 = vmatpush1.bf16.msra.mxu0 %v343
    %1124 = vmatprep.subr.bf16.mxu0 %v348
    %1125 = vmatpush1.bf16.msra.mxu0 %v347
    %1126 = vmatprep.subr.bf16.mxu0 %v352
    %1127 = vmatpush1.bf16.msra.mxu0 %v351
    %1128 = vmatprep.subr.bf16.mxu0 0
    %1129 = vmatpush1.bf16.msra.mxu0 0
    %1130 = vmatprep.subr.bf16.mxu0 0
    %1131 = vmatpush1.bf16.msra.mxu0 0
    %1132 = vmatprep.subr.bf16.mxu0 0
    %1133 = vmatpush1.bf16.msra.mxu0 0
    %1134 = vmatprep.subr.bf16.mxu0 0
    %1135 = vmatpush1.bf16.msra.mxu0 0
    %1136 = vmatprep.subr.bf16.mxu0 0
    %1137 = vmatpush1.bf16.msra.mxu0 0
    %1138 = vmatprep.subr.bf16.mxu0 0
    %1139 = vmatpush1.bf16.msra.mxu0 0
    %1140 = vmatprep.subr.bf16.mxu0 0
    %1141 = vmatpush1.bf16.msra.mxu0 0
    %1142 = vmatprep.subr.bf16.mxu0 0
    %1143 = vmatpush1.bf16.msra.mxu0 0
    %1144 = vmatprep.mubr.bf16.mxu0 0
    %1145 = vmatmul.mubr.bf16.gmra.mrb[0].mxu0 %v1110
    %v1146 = vpop.f32.mrb[0].mxu0
    %v1147 = vadd.f32 0.0, %v1146
    %v1148 = vpop.f32.mrb[0].mxu0
    %v1149 = vadd.f32 0.0, %v1148
    %v1150 = vpop.f32.mrb[0].mxu0
    %v1151 = vpop.f32.mrb[0].mxu0
    %1152 = vdwg.mxu0
    %1153 = vmatprep.subr.bf16.mxu0 %v326
    %1154 = vmatpush1.bf16.msra.mxu0 %v325
    %1155 = vmatprep.subr.bf16.mxu0 %v330
    %1156 = vmatpush1.bf16.msra.mxu0 %v329
    %1157 = vmatprep.subr.bf16.mxu0 %v334
    %1158 = vmatpush1.bf16.msra.mxu0 %v333
    %1159 = vmatprep.subr.bf16.mxu0 %v338
    %1160 = vmatpush1.bf16.msra.mxu0 %v337
    %1161 = vmatprep.subr.bf16.mxu0 %v342
    %1162 = vmatpush1.bf16.msra.mxu0 %v341
    %1163 = vmatprep.subr.bf16.mxu0 %v346
    %1164 = vmatpush1.bf16.msra.mxu0 %v345
    %1165 = vmatprep.subr.bf16.mxu0 %v350
    %1166 = vmatpush1.bf16.msra.mxu0 %v349
    %1167 = vmatprep.subr.bf16.mxu0 %v354
    %1168 = vmatpush1.bf16.msra.mxu0 %v353
    %1169 = vmatprep.subr.bf16.mxu0 0
    %1170 = vmatpush1.bf16.msra.mxu0 0
    %1171 = vmatprep.subr.bf16.mxu0 0
    %1172 = vmatpush1.bf16.msra.mxu0 0
    %1173 = vmatprep.subr.bf16.mxu0 0
    %1174 = vmatpush1.bf16.msra.mxu0 0
    %1175 = vmatprep.subr.bf16.mxu0 0
    %1176 = vmatpush1.bf16.msra.mxu0 0
    %1177 = vmatprep.subr.bf16.mxu0 0
    %1178 = vmatpush1.bf16.msra.mxu0 0
    %1179 = vmatprep.subr.bf16.mxu0 0
    %1180 = vmatpush1.bf16.msra.mxu0 0
    %1181 = vmatprep.subr.bf16.mxu0 0
    %1182 = vmatpush1.bf16.msra.mxu0 0
    %1183 = vmatprep.subr.bf16.mxu0 0
    %1184 = vmatpush1.bf16.msra.mxu0 0
    %1185 = vmatprep.mubr.bf16.mxu0 0
    %1186 = vmatmul.mubr.bf16.gmra.mrb[0].mxu0 %v1110
    %v1187 = vpop.f32.mrb[0].mxu0
    %v1188 = vadd.f32 0.0, %v1187
    %v1189 = vpop.f32.mrb[0].mxu0
    %v1190 = vadd.f32 0.0, %v1189
    %v1191 = vpop.f32.mrb[0].mxu0
    %v1192 = vpop.f32.mrb[0].mxu0
    %1193 = vdwg.mxu0
    %v1198 = vrot.slane %v1147, 2
    %v1199 = vrot.slane %v1149, 2
    %v1200 = vrot.slane %v1188, 2
    %v1201 = vrot.slane %v1190, 2
    %v1206 = vadd.f32 %v148, %v1198
    %v1207 = vadd.f32 %v150, %v1199
    %v1208 = vadd.f32 %v189, %v1200
    %v1209 = vadd.f32 %v191, %v1201
    %v1210 = vmul.f32 %v1206, 0.5
    %v1211 = vtanh.pop %v1210
    %v1212 = vmul.f32 %v1211, 0.5
    %v1213 = vadd.f32 %v1212, 0.5
    %v1214 = vmul.f32 %v1207, 0.5
    %v1215 = vtanh.pop %v1214
    %v1216 = vmul.f32 %v1215, 0.5
    %v1217 = vadd.f32 %v1216, 0.5
    %v1218 = vtanh.pop %v1208
    %v1219 = vmul.f32 %v1209, 0.5
    %v1220 = vtanh.pop %v1219
    %v1221 = vmul.f32 %v1220, 0.5
    %v1222 = vadd.f32 %v1221, 0.5
    %v1224 = vrot.slane %v1103, 7
    %v1226 = vmul.f32 %v1217, %v1224
    %v1227 = vmul.f32 %v1213, %v1218
    %v1228 = vadd.f32 %v1226, %v1227
    %v1229 = vtanh.pop %v1228
    %v1230 = vmul.f32 %v1222, %v1229
    %v1231 = vpack.c.bf16 %v1230, %v1230
    %v1233 = vrot.slane %v1231, 3
    %1235 = vmatprep.subr.bf16.mxu0 %v324
    %1236 = vmatpush1.bf16.msra.mxu0 %v323
    %1237 = vmatprep.subr.bf16.mxu0 %v328
    %1238 = vmatpush1.bf16.msra.mxu0 %v327
    %1239 = vmatprep.subr.bf16.mxu0 %v332
    %1240 = vmatpush1.bf16.msra.mxu0 %v331
    %1241 = vmatprep.subr.bf16.mxu0 %v336
    %1242 = vmatpush1.bf16.msra.mxu0 %v335
    %1243 = vmatprep.subr.bf16.mxu0 %v340
    %1244 = vmatpush1.bf16.msra.mxu0 %v339
    %1245 = vmatprep.subr.bf16.mxu0 %v344
    %1246 = vmatpush1.bf16.msra.mxu0 %v343
    %1247 = vmatprep.subr.bf16.mxu0 %v348
    %1248 = vmatpush1.bf16.msra.mxu0 %v347
    %1249 = vmatprep.subr.bf16.mxu0 %v352
    %1250 = vmatpush1.bf16.msra.mxu0 %v351
    %1251 = vmatprep.subr.bf16.mxu0 0
    %1252 = vmatpush1.bf16.msra.mxu0 0
    %1253 = vmatprep.subr.bf16.mxu0 0
    %1254 = vmatpush1.bf16.msra.mxu0 0
    %1255 = vmatprep.subr.bf16.mxu0 0
    %1256 = vmatpush1.bf16.msra.mxu0 0
    %1257 = vmatprep.subr.bf16.mxu0 0
    %1258 = vmatpush1.bf16.msra.mxu0 0
    %1259 = vmatprep.subr.bf16.mxu0 0
    %1260 = vmatpush1.bf16.msra.mxu0 0
    %1261 = vmatprep.subr.bf16.mxu0 0
    %1262 = vmatpush1.bf16.msra.mxu0 0
    %1263 = vmatprep.subr.bf16.mxu0 0
    %1264 = vmatpush1.bf16.msra.mxu0 0
    %1265 = vmatprep.subr.bf16.mxu0 0
    %1266 = vmatpush1.bf16.msra.mxu0 0
    %1267 = vmatprep.mubr.bf16.mxu0 0
    %1268 = vmatmul.mubr.bf16.gmra.mrb[0].mxu0 %v1233
    %v1269 = vpop.f32.mrb[0].mxu0
    %v1270 = vadd.f32 0.0, %v1269
    %v1271 = vpop.f32.mrb[0].mxu0
    %v1272 = vadd.f32 0.0, %v1271
    %v1273 = vpop.f32.mrb[0].mxu0
    %v1274 = vpop.f32.mrb[0].mxu0
    %1275 = vdwg.mxu0
    %1276 = vmatprep.subr.bf16.mxu0 %v326
    %1277 = vmatpush1.bf16.msra.mxu0 %v325
    %1278 = vmatprep.subr.bf16.mxu0 %v330
    %1279 = vmatpush1.bf16.msra.mxu0 %v329
    %1280 = vmatprep.subr.bf16.mxu0 %v334
    %1281 = vmatpush1.bf16.msra.mxu0 %v333
    %1282 = vmatprep.subr.bf16.mxu0 %v338
    %1283 = vmatpush1.bf16.msra.mxu0 %v337
    %1284 = vmatprep.subr.bf16.mxu0 %v342
    %1285 = vmatpush1.bf16.msra.mxu0 %v341
    %1286 = vmatprep.subr.bf16.mxu0 %v346
    %1287 = vmatpush1.bf16.msra.mxu0 %v345
    %1288 = vmatprep.subr.bf16.mxu0 %v350
    %1289 = vmatpush1.bf16.msra.mxu0 %v349
    %1290 = vmatprep.subr.bf16.mxu0 %v354
    %1291 = vmatpush1.bf16.msra.mxu0 %v353
    %1292 = vmatprep.subr.bf16.mxu0 0
    %1293 = vmatpush1.bf16.msra.mxu0 0
    %1294 = vmatprep.subr.bf16.mxu0 0
    %1295 = vmatpush1.bf16.msra.mxu0 0
    %1296 = vmatprep.subr.bf16.mxu0 0
    %1297 = vmatpush1.bf16.msra.mxu0 0
    %1298 = vmatprep.subr.bf16.mxu0 0
    %1299 = vmatpush1.bf16.msra.mxu0 0
    %1300 = vmatprep.subr.bf16.mxu0 0
    %1301 = vmatpush1.bf16.msra.mxu0 0
    %1302 = vmatprep.subr.bf16.mxu0 0
    %1303 = vmatpush1.bf16.msra.mxu0 0
    %1304 = vmatprep.subr.bf16.mxu0 0
    %1305 = vmatpush1.bf16.msra.mxu0 0
    %1306 = vmatprep.subr.bf16.mxu0 0
    %1307 = vmatpush1.bf16.msra.mxu0 0
    %1308 = vmatprep.mubr.bf16.mxu0 0
    %1309 = vmatmul.mubr.bf16.gmra.mrb[0].mxu0 %v1233
    %v1310 = vpop.f32.mrb[0].mxu0
    %v1311 = vadd.f32 0.0, %v1310
    %v1312 = vpop.f32.mrb[0].mxu0
    %v1313 = vadd.f32 0.0, %v1312
    %v1314 = vpop.f32.mrb[0].mxu0
    %v1315 = vpop.f32.mrb[0].mxu0
    %1316 = vdwg.mxu0
    %v1321 = vrot.slane %v1270, 1
    %v1322 = vrot.slane %v1272, 1
    %v1323 = vrot.slane %v1311, 1
    %v1324 = vrot.slane %v1313, 1
    %v1329 = vadd.f32 %v148, %v1321
    %v1330 = vadd.f32 %v150, %v1322
    %v1331 = vadd.f32 %v189, %v1323
    %v1332 = vadd.f32 %v191, %v1324
    %v1333 = vmul.f32 %v1329, 0.5
    %v1334 = vtanh.pop %v1333
    %v1335 = vmul.f32 %v1334, 0.5
    %v1336 = vadd.f32 %v1335, 0.5
    %v1337 = vmul.f32 %v1330, 0.5
    %v1338 = vtanh.pop %v1337
    %v1339 = vmul.f32 %v1338, 0.5
    %v1340 = vadd.f32 %v1339, 0.5
    %v1341 = vtanh.pop %v1331
    %v1342 = vmul.f32 %v1332, 0.5
    %v1343 = vtanh.pop %v1342
    %v1344 = vmul.f32 %v1343, 0.5
    %v1345 = vadd.f32 %v1344, 0.5
    %v1347 = vrot.slane %v1228, 7
    %v1349 = vmul.f32 %v1340, %v1347
    %v1350 = vmul.f32 %v1336, %v1341
    %v1351 = vadd.f32 %v1349, %v1350
    %v1352 = vtanh.pop %v1351
    %v1353 = vmul.f32 %v1345, %v1352
    %v1354 = vpack.c.bf16 %v1353, %v1353
    %v1355 = vld [vmem:[#allocation5] sm:$0xf]
    %v1356 = vld [vmem:[#allocation5 + $0x4] sm:$0xf]
    %v1357 = vld [vmem:[#allocation5 + $0x8] sm:$0xf]
    %v1358 = vld [vmem:[#allocation5 + $0xc] sm:$0xf]
    %v1359 = vld [vmem:[#allocation5 + $0x10] sm:$0xf]
    %v1360 = vld [vmem:[#allocation5 + $0x14] sm:$0xf]
    %v1361 = vld [vmem:[#allocation5 + $0x18] sm:$0xf]
    %v1362 = vld [vmem:[#allocation5 + $0x1c] sm:$0xf]
    %v1363 = vld [vmem:[#allocation5 + $0x20] sm:$0xf]
    %v1364 = vld [vmem:[#allocation5 + $0x24] sm:$0xf]
    %v1365 = vld [vmem:[#allocation5 + $0x28] sm:$0xf]
    %v1366 = vld [vmem:[#allocation5 + $0x2c] sm:$0xf]
    %v1367 = vld [vmem:[#allocation5 + $0x30] sm:$0xf]
    %v1368 = vld [vmem:[#allocation5 + $0x34] sm:$0xf]
    %v1369 = vld [vmem:[#allocation5 + $0x38] sm:$0xf]
    %v1370 = vld [vmem:[#allocation5 + $0x3c] sm:$0xf]
    %v1371 = vld [vmem:[%s5] sm:$0x1]
    %v1373 = vshrl.u32 %v1354, 16
    %v1375 = vrot.slane %v1373, 3
    %v1393 = vunpack.c.l.b16 %v1355
    %v1394 = vunpack.c.l.b16 %v1356
    %v1395 = vunpack.c.l.b16 %v1357
    %v1396 = vunpack.c.l.b16 %v1358
    %v1397 = vunpack.c.l.b16 %v1359
    %v1398 = vunpack.c.l.b16 %v1360
    %v1399 = vunpack.c.l.b16 %v1361
    %v1400 = vunpack.c.l.b16 %v1362
    %v1401 = vunpack.c.l.b16 %v1363
    %v1402 = vunpack.c.l.b16 %v1364
    %v1403 = vunpack.c.l.b16 %v1365
    %v1404 = vunpack.c.l.b16 %v1366
    %v1405 = vunpack.c.l.b16 %v1367
    %v1406 = vunpack.c.l.b16 %v1368
    %v1407 = vunpack.c.l.b16 %v1369
    %v1408 = vunpack.c.l.b16 %v1370
    %v1409 = vpack.c.b16 %v1394, %v1393
    %v1410 = vpack.c.b16 %v1396, %v1395
    %v1411 = vpack.c.b16 %v1398, %v1397
    %v1412 = vpack.c.b16 %v1400, %v1399
    %v1413 = vpack.c.b16 %v1402, %v1401
    %v1414 = vpack.c.b16 %v1404, %v1403
    %v1415 = vpack.c.b16 %v1406, %v1405
    %v1416 = vpack.c.b16 %v1408, %v1407
    %1425 = vmatprep.subr.bf16.mxu0 0
    %1426 = vmatpush1.bf16.msra.mxu0 %v1409
    %1427 = vmatprep.subr.bf16.mxu0 0
    %1428 = vmatpush1.bf16.msra.mxu0 %v1410
    %1429 = vmatprep.subr.bf16.mxu0 0
    %1430 = vmatpush1.bf16.msra.mxu0 %v1411
    %1431 = vmatprep.subr.bf16.mxu0 0
    %1432 = vmatpush1.bf16.msra.mxu0 %v1412
    %1433 = vmatprep.subr.bf16.mxu0 0
    %1434 = vmatpush1.bf16.msra.mxu0 %v1413
    %1435 = vmatprep.subr.bf16.mxu0 0
    %1436 = vmatpush1.bf16.msra.mxu0 %v1414
    %1437 = vmatprep.subr.bf16.mxu0 0
    %1438 = vmatpush1.bf16.msra.mxu0 %v1415
    %1439 = vmatprep.subr.bf16.mxu0 0
    %1440 = vmatpush1.bf16.msra.mxu0 %v1416
    %1441 = vmatprep.subr.bf16.mxu0 0
    %1442 = vmatpush1.bf16.msra.mxu0 0
    %1443 = vmatprep.subr.bf16.mxu0 0
    %1444 = vmatpush1.bf16.msra.mxu0 0
    %1445 = vmatprep.subr.bf16.mxu0 0
    %1446 = vmatpush1.bf16.msra.mxu0 0
    %1447 = vmatprep.subr.bf16.mxu0 0
    %1448 = vmatpush1.bf16.msra.mxu0 0
    %1449 = vmatprep.subr.bf16.mxu0 0
    %1450 = vmatpush1.bf16.msra.mxu0 0
    %1451 = vmatprep.subr.bf16.mxu0 0
    %1452 = vmatpush1.bf16.msra.mxu0 0
    %1453 = vmatprep.subr.bf16.mxu0 0
    %1454 = vmatpush1.bf16.msra.mxu0 0
    %1455 = vmatprep.subr.bf16.mxu0 0
    %1456 = vmatpush1.bf16.msra.mxu0 0
    %1457 = vmatprep.mubr.bf16.mxu0 0
    %1458 = vmatmul.mubr.bf16.gmra.mrb[0].mxu0 %v1375
    %v1459 = vpop.f32.mrb[0].mxu0
    %v1460 = vadd.f32 %v1371, %v1459
    %v1461 = vpop.f32.mrb[0].mxu0
    %v1462 = vpop.f32.mrb[0].mxu0
    %v1463 = vpop.f32.mrb[0].mxu0
    %1464 = vdwg.mxu0
    %1465 = vst [vmem:[#allocation7] sm:$0x1] %v1460
    // Predicated region
    $region34: #{tpu_custom_call.1} parent=1 // pred_check
      _
    $region35: #{tpu_custom_call.1} parent=1 // pred_check_branch
      %1467 = sbr.rel (0) target = $region37
    $region36: #{tpu_custom_call.1} parent=1 // pred_region
      %s1469 = ssub.s32 16, 16
      %1470 = vsyncadd [#allocation4], %s1469
      %s1472 = sshll.u32 [#allocation7], 4
      %s1473 = int_to_ptr.vmem [resolvable:$true] %s1472
      %1475 = dma.vmem_to_hbm [thread:$0]  %s1473, 16, %s6, [#allocation4]
    $region37: #{tpu_custom_call.1} parent=1 // pred_fallthru
      _
    // Predicated region
    $region38: #{tpu_custom_call.1} parent=1 // pred_check
      _
    $region39: #{tpu_custom_call.1} parent=1 // pred_check_branch
      %1477 = sbr.rel (0) target = $region41
    $region40: #{tpu_custom_call.1} parent=1 // pred_region
      %1478 = dma.done [#allocation4], 16
    $region41: #{tpu_custom_call.1} parent=1 // pred_fallthru
      _
    %1479 = vsyncpa [#allocation3], 1
    %1480 = vsyncpa [#allocation6], 1
    %1481 = vsyncpa [#allocation4], 1

</llo_original>
